<compile_context>
chip_gen: v6e
topology: v6e:2x2x1
jax: 0.10.0
libtpu: 0.0.40
codegen_flags: <defaults>
</compile_context>

<pallas_src>
import functools

import jax
import jax.numpy as jnp
from jax.experimental import pallas as pl
from jax.experimental.pallas import tpu as pltpu

# --------------------------------------------------------------------------
# Synthetic config (cfg.* values the PyTorch module would receive)
# --------------------------------------------------------------------------
CFG = dict(
    BETA_INV=4,
    ALPHA=2,
    FUSION_CONV_CHANNEL_RATIO=2,
    FUSION_KERNEL_SZ=5,          # unused by FuseFastToSlow2D (conv is 1x1)
    NUM_FRAMES=4,
    CROP_SIZE=32,
    INPUT_CHANNEL_NUM=[3, 3],
    NUM_CLASSES=10,
    TSM_N_DIV=[4, 4, 4, 4],
    TSM_FUSION_N_DIV=[4, 4, 4, 4],
)
N_SEGMENT = [CFG['NUM_FRAMES'] // CFG['ALPHA'], CFG['NUM_FRAMES']]   # [slow, fast]

_VMEM = pl.BlockSpec(memory_space=pltpu.MemorySpace.VMEM)
_BLOCK_PARAMS = pltpu.CompilerParams(vmem_limit_bytes=32 * 1024 * 1024)


# --------------------------------------------------------------------------
# Activations (used inside Pallas kernels, f32)
# --------------------------------------------------------------------------
def _apply_act(y, act):
    if act == 'relu':
        return jnp.maximum(y, 0.0)
    if act == 'hswish':
        return y * jnp.clip(y + 3.0, 0.0, 6.0) / 6.0
    if act == 'hsigmoid':
        return jnp.clip(y + 3.0, 0.0, 6.0) / 6.0
    if act == 'softmax':
        m = jnp.max(y, axis=-1, keepdims=True)
        e = jnp.exp(y - m)
        return e / jnp.sum(e, axis=-1, keepdims=True)
    return y  # 'linear'


# --------------------------------------------------------------------------
# Pallas kernel 1: matmul + bias (BN folded into weight) + activation.
# Used for the 3x3 stem conv (im2col), the fuse 1x1 convs, the stage-5 tail
# 1x1 conv and the classification head.  Everything here is tiny -> single
# full-VMEM invocation, no grid, no row padding.
# --------------------------------------------------------------------------
@functools.lru_cache(maxsize=None)
def _mm_kernel(act):
    def kernel(x_ref, w_ref, b_ref, o_ref):
        y = jnp.dot(x_ref[...].astype(w_ref.dtype), w_ref[...],
                    preferred_element_type=jnp.float32)
        y = y + b_ref[...]
        o_ref[...] = _apply_act(y, act).astype(o_ref.dtype)
    return kernel


def matmul_bias_act(x, w, b, act):
    """x:(M,Cin) f32, w:(Cin,Cout) bf16 (BN-folded), b:(1,Cout) f32."""
    M = x.shape[0]
    Cout = w.shape[1]
    return pl.pallas_call(
        _mm_kernel(act),
        out_shape=jax.ShapeDtypeStruct((M, Cout), jnp.float32),
        in_specs=[_VMEM] * 3,
        out_specs=_VMEM,
    )(x, w, b)


# --------------------------------------------------------------------------
# Pallas kernel 2: fully-fused inverted-residual block.
#   expand(1x1) -> depthwise(KxK, stride 1/2) -> project(1x1)
#   [-> SE pool/FC/gate/rescale] [-> shortcut (identity / 1x1 conv) + add]
# Activation rows use the "flat padded" layout:
#   rows = margin + NT*Hp*Wp + margin , margin = pad*Wp + pad
# so each depthwise tap is a static row-shifted slice of a VMEM scratch.
# Stride-2 subsampling (G), SE pooling (P) and gate broadcast (Pt) are
# selector/pooling matmuls with constant matrices.
# --------------------------------------------------------------------------
def _block_kernel(offsets, m_rows, act, has_g, has_se, shortcut, margin):
    kk = len(offsets)

    def kernel(*refs):
        h_scr = refs[-1]      # VMEM scratch (m_tot, Cexp) f32
        o_ref = refs[-2]
        it = iter(refs[:-2])
        xp = next(it)         # (m_tot, Cin)  f32, zero padded rows/margins
        mask = next(it)       # (m_tot, 1)    f32, 1 at interior rows
        w1 = next(it); b1 = next(it)
        w2 = next(it); b2 = next(it)
        w3 = next(it); b3 = next(it)
        g_ref = next(it) if has_g else None
        if has_se:
            p_ref = next(it); pt_ref = next(it)
            wse1 = next(it); bse1 = next(it)
            wse2 = next(it); bse2 = next(it)
        if shortcut == 'conv':
            wsc = next(it); bsc = next(it)

        x = xp[...]

        # ---- 1x1 expand + folded BN + act, keep padding rows exactly zero
        h = jnp.dot(x.astype(w1.dtype), w1[...],
                    preferred_element_type=jnp.float32) + b1[...]
        h_scr[...] = _apply_act(h, act) * mask[...]

        # ---- depthwise KxK as K*K shifted per-channel MACs
        acc = h_scr[offsets[0]:offsets[0] + m_rows, :] * w2[0:1, :]
        for t in range(1, kk):
            acc = acc + h_scr[offsets[t]:offsets[t] + m_rows, :] * w2[t:t + 1, :]
        if has_g:
            # stride-2: gather the strided interior rows (exact 0/1 selector)
            acc = jnp.dot(g_ref[...], acc, preferred_element_type=jnp.float32)
        d = _apply_act(acc + b2[...], act)

        # ---- 1x1 project + folded BN (linear)
        y = jnp.dot(d.astype(w3.dtype), w3[...],
                    preferred_element_type=jnp.float32) + b3[...]

        # ---- Squeeze-Excite (pool + FC/relu + FC + hsigmoid gate)
        if has_se:
            pooled = jnp.dot(p_ref[...], y, preferred_element_type=jnp.float32)
            hid = jnp.dot(pooled.astype(wse1.dtype), wse1[...],
                          preferred_element_type=jnp.float32) + bse1[...]
            hid = jnp.maximum(hid, 0.0)
            gate = jnp.dot(hid.astype(wse2.dtype), wse2[...],
                           preferred_element_type=jnp.float32) + bse2[...]
            gate = jnp.clip(gate + 3.0, 0.0, 6.0) / 6.0
            y = y * jnp.dot(pt_ref[...], gate, preferred_element_type=jnp.float32)

        # ---- shortcut + residual add (only stride 1)
        if shortcut == 'identity':
            y = y + xp[margin:margin + m_rows, :]
        elif shortcut == 'conv':
            sc = jnp.dot(xp[margin:margin + m_rows, :].astype(wsc.dtype),
                         wsc[...], preferred_element_type=jnp.float32) + bsc[...]
            y = y + sc

        o_ref[...] = y.astype(o_ref.dtype)

    return kernel


def block_forward(x, p, K, stride, act, has_se, tsm):
    """x:(NT,H,W,Cin) f32 -> (NT,Ho,Wo,Cout) f32, fully fused block."""
    if tsm is not None:
        x = temporal_shift(x, *tsm)
    NT, H, W, Cin = x.shape
    Cexp = p['w1'].shape[1]
    Cout = p['w3'].shape[1]
    pad = K // 2
    Hp, Wp = H + 2 * pad, W + 2 * pad
    margin = pad * Wp + pad
    m_rows = NT * Hp * Wp
    m_tot = m_rows + 2 * margin

    # spatially padded, row-flattened input with extra margin rows
    xp = jnp.pad(x, ((0, 0), (pad, pad), (pad, pad), (0, 0))).reshape(m_rows, Cin)
    xp = jnp.pad(xp, ((margin, margin), (0, 0)))

    interior = jnp.zeros((Hp, Wp), jnp.float32).at[pad:pad + H, pad:pad + W].set(1.0)
    mask = jnp.tile(interior.reshape(1, Hp * Wp), (NT, 1)).reshape(m_rows, 1)
    mask = jnp.pad(mask, ((margin, margin), (0, 0)))

    # static tap offsets into the flat padded layout
    offsets = tuple(margin + (ky - pad) * Wp + (kx - pad)
                    for ky in range(K) for kx in range(K))

    has_g = stride != 1
    if has_g:
        Ho = (H + 2 * pad - K) // stride + 1
        Wo = (W + 2 * pad - K) // stride + 1
        rows_out = NT * Ho * Wo
        cols = (jnp.arange(NT)[:, None, None] * (Hp * Wp)
                + (stride * jnp.arange(Ho)[None, :, None] + pad) * Wp
                + (stride * jnp.arange(Wo)[None, None, :] + pad)).reshape(-1)
        G = jax.nn.one_hot(cols, m_rows, dtype=jnp.float32)
    else:
        Ho, Wo = H, W
        rows_out = m_rows

    shortcut = None
    if stride == 1:
        shortcut = 'conv' if 'wsc' in p else 'identity'
    assert not (has_g and shortcut is not None)

    inputs = [xp, mask, p['w1'], p['b1'], p['w2'], p['b2'], p['w3'], p['b3']]
    if has_g:
        inputs.append(G)
    if has_se:
        eye = jnp.eye(NT, dtype=jnp.float32)
        if has_g:
            P = jnp.kron(eye, jnp.full((1, Ho * Wo), 1.0 / (Ho * Wo), jnp.float32))
            Pt = jnp.kron(eye, jnp.ones((Ho * Wo, 1), jnp.float32))
        else:
            P = jnp.kron(eye, interior.reshape(1, Hp * Wp) / float(H * W))
            Pt = jnp.kron(eye, jnp.ones((Hp * Wp, 1), jnp.float32))
        se = p['se']
        inputs += [P, Pt, se['w1'], se['b1'], se['w2'], se['b2']]
    if shortcut == 'conv':
        inputs += [p['wsc'], p['bsc']]

    kernel = _block_kernel(offsets, m_rows, act, has_g, has_se, shortcut, margin)
    out = pl.pallas_call(
        kernel,
        out_shape=jax.ShapeDtypeStruct((rows_out, Cout), jnp.float32),
        in_specs=[_VMEM] * len(inputs),
        out_specs=_VMEM,
        scratch_shapes=[pltpu.VMEM((m_tot, Cexp), jnp.float32)],
        compiler_params=_BLOCK_PARAMS,
    )(*inputs)

    if has_g:
        return out.reshape(NT, Ho, Wo, Cout)
    # stride-1: output is in padded flat layout -> slice the interior in glue
    return out.reshape(NT, Hp, Wp, Cout)[:, pad:pad + H, pad:pad + W, :]


# --------------------------------------------------------------------------
# JAX glue: stem dense conv (im2col), temporal shift, fusion, stages, head
# --------------------------------------------------------------------------
def conv2d_bias_act(x, w, b, act, K, stride, pad):
    """Dense KxK conv via (small) im2col + Pallas matmul.  w:(K*K*Cin, Cout)."""
    NT, H, W, Cin = x.shape
    Ho = (H + 2 * pad - K) // stride + 1
    Wo = (W + 2 * pad - K) // stride + 1
    xp = jnp.pad(x, ((0, 0), (pad, pad), (pad, pad), (0, 0)))
    cols = []
    for ky in range(K):
        for kx in range(K):
            cols.append(xp[:, ky:ky + stride * Ho:stride, kx:kx + stride * Wo:stride, :])
    patches = jnp.concatenate(cols, axis=-1).reshape(NT * Ho * Wo, K * K * Cin)
    y = matmul_bias_act(patches, w, b, act)
    return y.reshape(NT, Ho, Wo, w.shape[1])


def conv1x1_bias_act(x, w, b, act):
    NT, H, W, Cin = x.shape
    y = matmul_bias_act(x.reshape(NT * H * W, Cin), w, b, act)
    return y.reshape(NT, H, W, w.shape[1])


def temporal_shift(x, n_segment, n_div):
    """TSM shift on NHWC activations (applies to the following conv's input)."""
    nt, H, W, C = x.shape
    fold = C // n_div
    if fold == 0:
        return x
    n = nt // n_segment
    x5 = x.reshape(n, n_segment, H, W, C)
    zeros = jnp.zeros((n, 1, H, W, fold), x.dtype)
    left = jnp.concatenate([x5[:, 1:, :, :, :fold], zeros], axis=1)
    right = jnp.concatenate([zeros, x5[:, :-1, :, :, fold:2 * fold]], axis=1)
    keep = x5[:, :, :, :, 2 * fold:]
    out = jnp.concatenate([left, right, keep], axis=-1)
    return out.reshape(nt, H, W, C)


def stem_forward(x, p):
    x = conv2d_bias_act(x, p['conv1_w'], p['bn1_b'], 'hswish', K=3, stride=2, pad=1)
    x = block_forward(x, p['block1'], K=3, stride=1, act='relu', has_se=False, tsm=None)
    return x


def fuse_forward(x_s, x_f, p, alpha, n_segment_fast, n_div):
    h = temporal_shift(x_f, n_segment_fast, n_div)
    fuse = conv1x1_bias_act(h, p['w'], p['b'], 'relu')
    nt, H, W, c = fuse.shape
    # PyTorch: fuse.view(nt//alpha, c*alpha, h, w) in NCHW -> new channel = a*c + ch
    fuse = fuse.reshape(nt // alpha, alpha, H, W, c)
    fuse = jnp.transpose(fuse, (0, 2, 3, 1, 4)).reshape(nt // alpha, H, W, alpha * c)
    return jnp.concatenate([x_s, fuse], axis=-1), x_f


def stage_block_cfgs(dim_in, b, stage_idx):
    if stage_idx == 2:
        return [
            dict(K=3, cin=dim_in // b, cexp=64 // b, cout=24 // b, act='relu', se=False, stride=2, tsm=False),
            dict(K=3, cin=24 // b, cexp=72 // b, cout=24 // b, act='relu', se=False, stride=1, tsm=True),
        ], None
    if stage_idx == 3:
        return [
            dict(K=5, cin=dim_in // b, cexp=72 // b, cout=40 // b, act='relu', se=True, stride=2, tsm=False),
            dict(K=5, cin=40 // b, cexp=120 // b, cout=40 // b, act='relu', se=True, stride=1, tsm=True),
            dict(K=5, cin=40 // b, cexp=120 // b, cout=40 // b, act='relu', se=True, stride=1, tsm=True),
        ], None
    if stage_idx == 4:
        return [
            dict(K=3, cin=dim_in // b, cexp=240 // b, cout=80 // b, act='hswish', se=False, stride=2, tsm=False),
            dict(K=3, cin=80 // b, cexp=200 // b, cout=80 // b, act='hswish', se=False, stride=1, tsm=True),
            dict(K=3, cin=80 // b, cexp=184 // b, cout=80 // b, act='hswish', se=False, stride=1, tsm=True),
            dict(K=3, cin=80 // b, cexp=184 // b, cout=80 // b, act='hswish', se=False, stride=1, tsm=True),
            dict(K=3, cin=80 // b, cexp=480 // b, cout=112 // b, act='hswish', se=True, stride=1, tsm=False),
            dict(K=3, cin=112 // b, cexp=672 // b, cout=112 // b, act='hswish', se=True, stride=1, tsm=True),
        ], None
    if stage_idx == 5:
        blocks = [
            dict(K=5, cin=dim_in // b, cexp=672 // b, cout=160 // b, act='hswish', se=True, stride=1, tsm=False),
            dict(K=5, cin=160 // b, cexp=672 // b, cout=160 // b, act='hswish', se=True, stride=2, tsm=True),
            dict(K=5, cin=160 // b, cexp=960 // b, cout=160 // b, act='hswish', se=True, stride=1, tsm=True),
        ]
        return blocks, (160 // b, 960 // b)
    raise ValueError(stage_idx)


def stage_forward(x, p, n_segment, n_div):
    for cfg, bp in zip(p['cfgs'], p['blocks']):
        tsm = (n_segment, n_div) if cfg['tsm'] else None
        x = block_forward(x, bp, cfg['K'], cfg['stride'], cfg['act'], cfg['se'], tsm)
    if 'tail_w' in p:
        x = conv1x1_bias_act(x, p['tail_w'], p['tail_b'], 'hswish')
    return x


# --------------------------------------------------------------------------
# Deterministic parameter construction (He init + folded eval-mode BN, bf16)
# --------------------------------------------------------------------------
class ParamGen:
    def __init__(self, seed):
        self._key = jax.random.PRNGKey(seed)

    def key(self):
        self._key, k = jax.random.split(self._key)
        return k

    def conv(self, shape, fan_in):
        return jax.random.normal(self.key(), shape, jnp.float32) * (2.0 / fan_in) ** 0.5

    def bn(self, c, eps=1e-5):
        gamma = 1.0 + 0.1 * jax.random.normal(self.key(), (c,), jnp.float32)
        beta = 0.1 * jax.random.normal(self.key(), (c,), jnp.float32)
        rmean = 0.1 * jax.random.normal(self.key(), (c,), jnp.float32)
        rvar = 1.0 + 0.1 * jax.random.uniform(self.key(), (c,), jnp.float32)
        scale = gamma / jnp.sqrt(rvar + eps)
        bias = beta - rmean * scale
        return scale.reshape(1, c), bias.reshape(1, c)


def _fold(w, s, dtype=jnp.bfloat16):
    return (w * s).astype(dtype)


def make_block(pg, K, cin, cexp, cout, has_se, stride):
    p = {}
    w1 = pg.conv((cin, cexp), cin)
    s1, p['b1'] = pg.bn(cexp)
    p['w1'] = _fold(w1, s1)
    w2 = pg.conv((K * K, cexp), K * K)                 # depthwise taps
    s2, p['b2'] = pg.bn(cexp)
    p['w2'] = (w2 * s2)                                # f32 (VPU elementwise path)
    w3 = pg.conv((cexp, cout), cexp)
    s3, p['b3'] = pg.bn(cout)
    p['w3'] = _fold(w3, s3)
    if has_se:
        cr = cout // 4
        wse1 = pg.conv((cout, cr), cout)
        sse1, bse1 = pg.bn(cr)
        wse2 = pg.conv((cr, cout), cr)
        sse2, bse2 = pg.bn(cout)
        p['se'] = dict(w1=_fold(wse1, sse1), b1=bse1,
                       w2=_fold(wse2, sse2), b2=bse2)
    if stride == 1 and cin != cout:
        wsc = pg.conv((cin, cout), cin)
        ssc, p['bsc'] = pg.bn(cout)
        p['wsc'] = _fold(wsc, ssc)
    return p


def make_stem(pg, cin, b):
    c = 16 // b
    w = pg.conv((9 * cin, c), 9 * cin)
    s, bias = pg.bn(c)
    p = {'conv1_w': _fold(w, s), 'bn1_b': bias}
    p['block1'] = make_block(pg, 3, c, c, c, False, 1)
    return p


def make_fuse(pg, dim_in, ratio, alpha):
    cout = dim_in * ratio // alpha
    w = pg.conv((dim_in, cout), dim_in)
    s, b = pg.bn(cout)
    return {'w': _fold(w, s), 'b': b}


def make_stage(pg, dim_in, b, stage_idx):
    cfgs, tail = stage_block_cfgs(dim_in, b, stage_idx)
    p = {'cfgs': cfgs,
         'blocks': [make_block(pg, c['K'], c['cin'], c['cexp'], c['cout'], c['se'], c['stride'])
                    for c in cfgs]}
    if tail is not None:
        cin_t, cout_t = tail
        w = pg.conv((cin_t, cout_t), cin_t)
        s, bias = pg.bn(cout_t)
        p['tail_w'] = _fold(w, s)
        p['tail_b'] = bias
    return p


def build_params(pg):
    B = CFG['BETA_INV']
    R = CFG['FUSION_CONV_CHANNEL_RATIO']
    A = CFG['ALPHA']
    odr = B // R
    p = {}
    p['s1'] = [make_stem(pg, CFG['INPUT_CHANNEL_NUM'][0], 1),
               make_stem(pg, CFG['INPUT_CHANNEL_NUM'][1], B)]
    p['s1_fuse'] = make_fuse(pg, 16 // B, R, A)
    p['s2'] = [make_stage(pg, 16 + 16 // odr // A * A, 1, 2), make_stage(pg, 16, B, 2)]
    p['s2_fuse'] = make_fuse(pg, 24 // B, R, A)
    p['s3'] = [make_stage(pg, 24 + 24 // odr // A * A, 1, 3), make_stage(pg, 24, B, 3)]
    p['s3_fuse'] = make_fuse(pg, 40 // B, R, A)
    p['s4'] = [make_stage(pg, 40 + 40 // odr // A * A, 1, 4), make_stage(pg, 40, B, 4)]
    p['s4_fuse'] = make_fuse(pg, 112 // B, R, A)
    p['s5'] = [make_stage(pg, 112 + 112 // odr // A * A, 1, 5), make_stage(pg, 112, B, 5)]
    head_in = 960 + 960 // B
    nc = CFG['NUM_CLASSES']
    p['head'] = dict(
        w=pg.conv((head_in, nc), head_in).astype(jnp.bfloat16),
        b=0.01 * jax.random.normal(pg.key(), (1, nc), jnp.float32),
    )
    return p


# --------------------------------------------------------------------------
# Full SlowFast_MobileNetV3 forward
# --------------------------------------------------------------------------
def slowfast_forward(params, x_list):
    # x_list: [slow (N,3,T_s,H,W), fast (N,3,T_f,H,W)]  -- PyTorch NCTHW inputs
    feats = []
    for x in x_list:
        n, c, t, h, w = x.shape
        x = jnp.transpose(x, (0, 2, 1, 3, 4)).reshape(n * t, c, h, w)   # (nt,c,h,w)
        feats.append(jnp.transpose(x, (0, 2, 3, 1)))                    # -> NHWC
    xs, xf = feats

    A = CFG['ALPHA']
    nd = CFG['TSM_N_DIV']
    fnd = CFG['TSM_FUSION_N_DIV']

    xs = stem_forward(xs, params['s1'][0])
    xf = stem_forward(xf, params['s1'][1])
    xs, xf = fuse_forward(xs, xf, params['s1_fuse'], A, N_SEGMENT[1], fnd[0])

    for stage_key, fuse_key, si in (('s2', 's2_fuse', 2), ('s3', 's3_fuse', 3),
                                    ('s4', 's4_fuse', 4)):
        xs = stage_forward(xs, params[stage_key][0], N_SEGMENT[0], nd[si - 2])
        xf = stage_forward(xf, params[stage_key][1], N_SEGMENT[1], nd[si - 2])
        xs, xf = fuse_forward(xs, xf, params[fuse_key], A, N_SEGMENT[1], fnd[si - 1])

    xs = stage_forward(xs, params['s5'][0], N_SEGMENT[0], nd[3])
    xf = stage_forward(xf, params['s5'][1], N_SEGMENT[1], nd[3])

    # Head (ResNetBasicHead, eval branch, dropout=0): avg-pool over (T,H,W),
    # concat pathways on channels, linear projection + softmax (Pallas matmul).
    def pool(x, seg):
        nt, H, W, C = x.shape
        return x.reshape(nt // seg, seg, H, W, C).mean(axis=(1, 2, 3))

    feat = jnp.concatenate([pool(xs, N_SEGMENT[0]), pool(xf, N_SEGMENT[1])], axis=-1)
    hp = params['head']
    return matmul_bias_act(feat, hp['w'], hp['b'], 'softmax')


# --------------------------------------------------------------------------
if __name__ == "__main__":
    key = jax.random.PRNGKey(0)
    k_slow, k_fast = jax.random.split(key)
    N = 2
    S = CFG['CROP_SIZE']
    x_slow = jax.random.normal(k_slow, (N, 3, N_SEGMENT[0], S, S), jnp.float32)
    x_fast = jax.random.normal(k_fast, (N, 3, N_SEGMENT[1], S, S), jnp.float32)

    params = build_params(ParamGen(1))
    out = slowfast_forward(params, [x_slow, x_fast])
    out = jax.block_until_ready(out)

    assert out.shape == (N, CFG['NUM_CLASSES']), out.shape
    assert bool(jnp.all(jnp.isfinite(out)))
    print("KERNEL_OK")
</pallas_src>

<mosaic_0001>
module attributes {stable_mosaic.version = 11 : i64} {
  func.func @kernel(%arg0: memref<1024x27xf32, #tpu.memory_space<vmem>>, %arg1: memref<27x16xbf16, #tpu.memory_space<vmem>>, %arg2: memref<1x16xf32, #tpu.memory_space<vmem>>, %arg3: memref<1024x16xf32, #tpu.memory_space<vmem>>) attributes {dimension_semantics = [], scalar_prefetch = 0 : i64, scratch_operands = 0 : i64, tpu.core_type = #tpu.core_type<tc>} {
    %c0 = arith.constant 0 : index
    %c0_0 = arith.constant 0 : index
    %0 = vector.load %arg0[%c0, %c0_0] : memref<1024x27xf32, #tpu.memory_space<vmem>>, vector<1024x27xf32>
    %1 = arith.truncf %0 : vector<1024x27xf32> to vector<1024x27xbf16>
    %c0_1 = arith.constant 0 : index
    %c0_2 = arith.constant 0 : index
    %2 = vector.load %arg1[%c0_1, %c0_2] : memref<27x16xbf16, #tpu.memory_space<vmem>>, vector<27x16xbf16>
    %cst = arith.constant dense<0.000000e+00> : vector<1024x16xf32>
    %3 = tpu.matmul %1, %2, %cst {dimension_numbers = #tpu.dot_dimension_numbers<[1], [0], [0], [1], [0, 0, 1, 1], [], []>} : vector<1024x27xbf16>, vector<27x16xbf16>, vector<1024x16xf32> -> vector<1024x16xf32>
    %c0_3 = arith.constant 0 : index
    %c0_4 = arith.constant 0 : index
    %4 = vector.load %arg2[%c0_3, %c0_4] : memref<1x16xf32, #tpu.memory_space<vmem>>, vector<1x16xf32>
    %5 = vector.broadcast %4 : vector<1x16xf32> to vector<1024x16xf32>
    %6 = arith.addf %3, %5 : vector<1024x16xf32>
    %cst_5 = arith.constant 3.000000e+00 : f32
    %7 = vector.broadcast %cst_5 : f32 to vector<1024x16xf32>
    %8 = arith.addf %6, %7 : vector<1024x16xf32>
    %cst_6 = arith.constant 0.000000e+00 : f32
    %cst_7 = arith.constant 6.000000e+00 : f32
    %9 = vector.broadcast %cst_6 : f32 to vector<1024x16xf32>
    %10 = arith.maximumf %9, %8 : vector<1024x16xf32>
    %11 = vector.broadcast %cst_7 : f32 to vector<1024x16xf32>
    %12 = arith.minimumf %11, %10 : vector<1024x16xf32>
    %13 = arith.mulf %6, %12 : vector<1024x16xf32>
    %cst_8 = arith.constant 6.000000e+00 : f32
    %14 = vector.broadcast %cst_8 : f32 to vector<1024x16xf32>
    %15 = arith.divf %13, %14 : vector<1024x16xf32>
    %c0_9 = arith.constant 0 : index
    %c0_10 = arith.constant 0 : index
    %16 = vector.load %arg3[%c0_9, %c0_10] : memref<1024x16xf32, #tpu.memory_space<vmem>>, vector<1024x16xf32>
    tpu.vector_store %arg3[%c0_9, %c0_10], %15 {strides = array<i32>} : memref<1024x16xf32, #tpu.memory_space<vmem>>, vector<1024x16xf32>,
    return
  }
}

</mosaic_0001>

<llo_original>
// kernel: tpu_custom_call.1
$region0: #{tpu_custom_call.1}
  #allocation0 [shape = 'u32[]', space=smem, size = 0x4, offset = 0x4, fixed_abs, tag = 'smem constant byte address 0x4 - core index']
  #allocation1 [shape = 'u32[144,128]{1,0:T(1,128)}', space=vmem, size = 0x12000, scoped, tag = 'internal scratch']
  %s0 = inlined_call_operand.vmem [shape: f32[1024,27], index: 0, kind: input, shape index: {}]
  %s1 = inlined_call_operand.vmem [shape: bf16[27,16], index: 1, kind: input, shape index: {}]
  %s2 = inlined_call_operand.vmem [shape: f32[1,16], index: 2, kind: input, shape index: {}]
  %s3 = inlined_call_operand.vmem [shape: f32[1024,16], index: 3, kind: output, shape index: {}]
  %s4 = sld [smem:[#allocation0]]
  $region22: #{tpu_custom_call.1} parent=0
    _
  %s6 = ssub.s32 1, %s4
  %s7 = scalar_select 0, %s6, %s4
  // Predicated region
  $region2: #{tpu_custom_call.1} parent=0 // pred_check
    _
  $region3: #{tpu_custom_call.1} parent=0 // pred_check_branch
    %9 = sbr.rel (0) target = $region5
  $region4: #{tpu_custom_call.1} parent=0 // pred_region
    _
  $region5: #{tpu_custom_call.1} parent=0 // pred_fallthru
    _
  // Predicated region
  $region6: #{tpu_custom_call.1} parent=0 // pred_check
    _
  $region7: #{tpu_custom_call.1} parent=0 // pred_check_branch
    %11 = sbr.rel (0) target = $region9
  $region8: #{tpu_custom_call.1} parent=0 // pred_region
    _
  $region9: #{tpu_custom_call.1} parent=0 // pred_fallthru
    _
  // Predicated region
  $region10: #{tpu_custom_call.1} parent=0 // pred_check
    _
  $region11: #{tpu_custom_call.1} parent=0 // pred_check_branch
    %13 = sbr.rel (0) target = $region13
  $region12: #{tpu_custom_call.1} parent=0 // pred_region
    _
  $region13: #{tpu_custom_call.1} parent=0 // pred_fallthru
    _
  %v15 = vld [vmem:[%s0] sm:$0xff]
  %v16 = vld [vmem:[%s0 + $0x8] sm:$0xff]
  %v17 = vld [vmem:[%s0 + $0x10] sm:$0xff]
  %v18 = vld [vmem:[%s0 + $0x18] sm:$0xff]
  %v19 = vld [vmem:[%s0 + $0x20] sm:$0xff]
  %v20 = vld [vmem:[%s0 + $0x28] sm:$0xff]
  %v21 = vld [vmem:[%s0 + $0x30] sm:$0xff]
  %v22 = vld [vmem:[%s0 + $0x38] sm:$0xff]
  %v23 = vld [vmem:[%s0 + $0x40] sm:$0xff]
  %v24 = vld [vmem:[%s0 + $0x48] sm:$0xff]
  %v25 = vld [vmem:[%s0 + $0x50] sm:$0xff]
  %v26 = vld [vmem:[%s0 + $0x58] sm:$0xff]
  %v27 = vld [vmem:[%s0 + $0x60] sm:$0xff]
  %v28 = vld [vmem:[%s0 + $0x68] sm:$0xff]
  %v29 = vld [vmem:[%s0 + $0x70] sm:$0xff]
  %v30 = vld [vmem:[%s0 + $0x78] sm:$0xff]
  %v31 = vld [vmem:[%s0 + $0x80] sm:$0xff]
  %v32 = vld [vmem:[%s0 + $0x88] sm:$0xff]
  %v33 = vld [vmem:[%s0 + $0x90] sm:$0xff]
  %v34 = vld [vmem:[%s0 + $0x98] sm:$0xff]
  %v35 = vld [vmem:[%s0 + $0xa0] sm:$0xff]
  %v36 = vld [vmem:[%s0 + $0xa8] sm:$0xff]
  %v37 = vld [vmem:[%s0 + $0xb0] sm:$0xff]
  %v38 = vld [vmem:[%s0 + $0xb8] sm:$0xff]
  %v39 = vld [vmem:[%s0 + $0xc0] sm:$0xff]
  %v40 = vld [vmem:[%s0 + $0xc8] sm:$0xff]
  %v41 = vld [vmem:[%s0 + $0xd0] sm:$0xff]
  %v42 = vld [vmem:[%s0 + $0xd8] sm:$0xff]
  %v43 = vld [vmem:[%s0 + $0xe0] sm:$0xff]
  %v44 = vld [vmem:[%s0 + $0xe8] sm:$0xff]
  %v45 = vld [vmem:[%s0 + $0xf0] sm:$0xff]
  %v46 = vld [vmem:[%s0 + $0xf8] sm:$0xff]
  %v47 = vld [vmem:[%s0 + $0x100] sm:$0xff]
  %v48 = vld [vmem:[%s0 + $0x108] sm:$0xff]
  %v49 = vld [vmem:[%s0 + $0x110] sm:$0xff]
  %v50 = vld [vmem:[%s0 + $0x118] sm:$0xff]
  %v51 = vld [vmem:[%s0 + $0x120] sm:$0xff]
  %v52 = vld [vmem:[%s0 + $0x128] sm:$0xff]
  %v53 = vld [vmem:[%s0 + $0x130] sm:$0xff]
  %v54 = vld [vmem:[%s0 + $0x138] sm:$0xff]
  %v55 = vld [vmem:[%s0 + $0x140] sm:$0xff]
  %v56 = vld [vmem:[%s0 + $0x148] sm:$0xff]
  %v57 = vld [vmem:[%s0 + $0x150] sm:$0xff]
  %v58 = vld [vmem:[%s0 + $0x158] sm:$0xff]
  %v59 = vld [vmem:[%s0 + $0x160] sm:$0xff]
  %v60 = vld [vmem:[%s0 + $0x168] sm:$0xff]
  %v61 = vld [vmem:[%s0 + $0x170] sm:$0xff]
  %v62 = vld [vmem:[%s0 + $0x178] sm:$0xff]
  %v63 = vld [vmem:[%s0 + $0x180] sm:$0xff]
  %v64 = vld [vmem:[%s0 + $0x188] sm:$0xff]
  %v65 = vld [vmem:[%s0 + $0x190] sm:$0xff]
  %v66 = vld [vmem:[%s0 + $0x198] sm:$0xff]
  %v67 = vld [vmem:[%s0 + $0x1a0] sm:$0xff]
  %v68 = vld [vmem:[%s0 + $0x1a8] sm:$0xff]
  %v69 = vld [vmem:[%s0 + $0x1b0] sm:$0xff]
  %v70 = vld [vmem:[%s0 + $0x1b8] sm:$0xff]
  %v71 = vld [vmem:[%s0 + $0x1c0] sm:$0xff]
  %v72 = vld [vmem:[%s0 + $0x1c8] sm:$0xff]
  %v73 = vld [vmem:[%s0 + $0x1d0] sm:$0xff]
  %v74 = vld [vmem:[%s0 + $0x1d8] sm:$0xff]
  %v75 = vld [vmem:[%s0 + $0x1e0] sm:$0xff]
  %v76 = vld [vmem:[%s0 + $0x1e8] sm:$0xff]
  %v77 = vld [vmem:[%s0 + $0x1f0] sm:$0xff]
  %v78 = vld [vmem:[%s0 + $0x1f8] sm:$0xff]
  %v79 = vld [vmem:[%s0 + $0x200] sm:$0xff]
  %v80 = vld [vmem:[%s0 + $0x208] sm:$0xff]
  %v81 = vld [vmem:[%s0 + $0x210] sm:$0xff]
  %v82 = vld [vmem:[%s0 + $0x218] sm:$0xff]
  %v83 = vld [vmem:[%s0 + $0x220] sm:$0xff]
  %v84 = vld [vmem:[%s0 + $0x228] sm:$0xff]
  %v85 = vld [vmem:[%s0 + $0x230] sm:$0xff]
  %v86 = vld [vmem:[%s0 + $0x238] sm:$0xff]
  %v87 = vld [vmem:[%s0 + $0x240] sm:$0xff]
  %v88 = vld [vmem:[%s0 + $0x248] sm:$0xff]
  %v89 = vld [vmem:[%s0 + $0x250] sm:$0xff]
  %v90 = vld [vmem:[%s0 + $0x258] sm:$0xff]
  %v91 = vld [vmem:[%s0 + $0x260] sm:$0xff]
  %v92 = vld [vmem:[%s0 + $0x268] sm:$0xff]
  %v93 = vld [vmem:[%s0 + $0x270] sm:$0xff]
  %v94 = vld [vmem:[%s0 + $0x278] sm:$0xff]
  %v95 = vld [vmem:[%s0 + $0x280] sm:$0xff]
  %v96 = vld [vmem:[%s0 + $0x288] sm:$0xff]
  %v97 = vld [vmem:[%s0 + $0x290] sm:$0xff]
  %v98 = vld [vmem:[%s0 + $0x298] sm:$0xff]
  %v99 = vld [vmem:[%s0 + $0x2a0] sm:$0xff]
  %v100 = vld [vmem:[%s0 + $0x2a8] sm:$0xff]
  %v101 = vld [vmem:[%s0 + $0x2b0] sm:$0xff]
  %v102 = vld [vmem:[%s0 + $0x2b8] sm:$0xff]
  %v103 = vld [vmem:[%s0 + $0x2c0] sm:$0xff]
  %v104 = vld [vmem:[%s0 + $0x2c8] sm:$0xff]
  %v105 = vld [vmem:[%s0 + $0x2d0] sm:$0xff]
  %v106 = vld [vmem:[%s0 + $0x2d8] sm:$0xff]
  %v107 = vld [vmem:[%s0 + $0x2e0] sm:$0xff]
  %v108 = vld [vmem:[%s0 + $0x2e8] sm:$0xff]
  %v109 = vld [vmem:[%s0 + $0x2f0] sm:$0xff]
  %v110 = vld [vmem:[%s0 + $0x2f8] sm:$0xff]
  %v111 = vld [vmem:[%s0 + $0x300] sm:$0xff]
  %v112 = vld [vmem:[%s0 + $0x308] sm:$0xff]
  %v113 = vld [vmem:[%s0 + $0x310] sm:$0xff]
  %v114 = vld [vmem:[%s0 + $0x318] sm:$0xff]
  %v115 = vld [vmem:[%s0 + $0x320] sm:$0xff]
  %v116 = vld [vmem:[%s0 + $0x328] sm:$0xff]
  %v117 = vld [vmem:[%s0 + $0x330] sm:$0xff]
  %v118 = vld [vmem:[%s0 + $0x338] sm:$0xff]
  %v119 = vld [vmem:[%s0 + $0x340] sm:$0xff]
  %v120 = vld [vmem:[%s0 + $0x348] sm:$0xff]
  %v121 = vld [vmem:[%s0 + $0x350] sm:$0xff]
  %v122 = vld [vmem:[%s0 + $0x358] sm:$0xff]
  %v123 = vld [vmem:[%s0 + $0x360] sm:$0xff]
  %v124 = vld [vmem:[%s0 + $0x368] sm:$0xff]
  %v125 = vld [vmem:[%s0 + $0x370] sm:$0xff]
  %v126 = vld [vmem:[%s0 + $0x378] sm:$0xff]
  %v127 = vld [vmem:[%s0 + $0x380] sm:$0xff]
  %v128 = vld [vmem:[%s0 + $0x388] sm:$0xff]
  %v129 = vld [vmem:[%s0 + $0x390] sm:$0xff]
  %v130 = vld [vmem:[%s0 + $0x398] sm:$0xff]
  %v131 = vld [vmem:[%s0 + $0x3a0] sm:$0xff]
  %v132 = vld [vmem:[%s0 + $0x3a8] sm:$0xff]
  %v133 = vld [vmem:[%s0 + $0x3b0] sm:$0xff]
  %v134 = vld [vmem:[%s0 + $0x3b8] sm:$0xff]
  %v135 = vld [vmem:[%s0 + $0x3c0] sm:$0xff]
  %v136 = vld [vmem:[%s0 + $0x3c8] sm:$0xff]
  %v137 = vld [vmem:[%s0 + $0x3d0] sm:$0xff]
  %v138 = vld [vmem:[%s0 + $0x3d8] sm:$0xff]
  %v139 = vld [vmem:[%s0 + $0x3e0] sm:$0xff]
  %v140 = vld [vmem:[%s0 + $0x3e8] sm:$0xff]
  %v141 = vld [vmem:[%s0 + $0x3f0] sm:$0xff]
  %v142 = vld [vmem:[%s0 + $0x3f8] sm:$0xff]
  %v143 = vpack.c.bf16 %v16, %v15
  %v144 = vpack.c.bf16 %v18, %v17
  %v145 = vpack.c.bf16 %v20, %v19
  %v146 = vpack.c.bf16 %v22, %v21
  %v147 = vpack.c.bf16 %v24, %v23
  %v148 = vpack.c.bf16 %v26, %v25
  %v149 = vpack.c.bf16 %v28, %v27
  %v150 = vpack.c.bf16 %v30, %v29
  %v151 = vpack.c.bf16 %v32, %v31
  %v152 = vpack.c.bf16 %v34, %v33
  %v153 = vpack.c.bf16 %v36, %v35
  %v154 = vpack.c.bf16 %v38, %v37
  %v155 = vpack.c.bf16 %v40, %v39
  %v156 = vpack.c.bf16 %v42, %v41
  %v157 = vpack.c.bf16 %v44, %v43
  %v158 = vpack.c.bf16 %v46, %v45
  %v159 = vpack.c.bf16 %v48, %v47
  %v160 = vpack.c.bf16 %v50, %v49
  %v161 = vpack.c.bf16 %v52, %v51
  %v162 = vpack.c.bf16 %v54, %v53
  %v163 = vpack.c.bf16 %v56, %v55
  %v164 = vpack.c.bf16 %v58, %v57
  %v165 = vpack.c.bf16 %v60, %v59
  %v166 = vpack.c.bf16 %v62, %v61
  %v167 = vpack.c.bf16 %v64, %v63
  %v168 = vpack.c.bf16 %v66, %v65
  %v169 = vpack.c.bf16 %v68, %v67
  %v170 = vpack.c.bf16 %v70, %v69
  %v171 = vpack.c.bf16 %v72, %v71
  %v172 = vpack.c.bf16 %v74, %v73
  %v173 = vpack.c.bf16 %v76, %v75
  %v174 = vpack.c.bf16 %v78, %v77
  %v175 = vpack.c.bf16 %v80, %v79
  %v176 = vpack.c.bf16 %v82, %v81
  %v177 = vpack.c.bf16 %v84, %v83
  %v178 = vpack.c.bf16 %v86, %v85
  %v179 = vpack.c.bf16 %v88, %v87
  %v180 = vpack.c.bf16 %v90, %v89
  %v181 = vpack.c.bf16 %v92, %v91
  %v182 = vpack.c.bf16 %v94, %v93
  %v183 = vpack.c.bf16 %v96, %v95
  %v184 = vpack.c.bf16 %v98, %v97
  %v185 = vpack.c.bf16 %v100, %v99
  %v186 = vpack.c.bf16 %v102, %v101
  %v187 = vpack.c.bf16 %v104, %v103
  %v188 = vpack.c.bf16 %v106, %v105
  %v189 = vpack.c.bf16 %v108, %v107
  %v190 = vpack.c.bf16 %v110, %v109
  %v191 = vpack.c.bf16 %v112, %v111
  %v192 = vpack.c.bf16 %v114, %v113
  %v193 = vpack.c.bf16 %v116, %v115
  %v194 = vpack.c.bf16 %v118, %v117
  %v195 = vpack.c.bf16 %v120, %v119
  %v196 = vpack.c.bf16 %v122, %v121
  %v197 = vpack.c.bf16 %v124, %v123
  %v198 = vpack.c.bf16 %v126, %v125
  %v199 = vpack.c.bf16 %v128, %v127
  %v200 = vpack.c.bf16 %v130, %v129
  %v201 = vpack.c.bf16 %v132, %v131
  %v202 = vpack.c.bf16 %v134, %v133
  %v203 = vpack.c.bf16 %v136, %v135
  %v204 = vpack.c.bf16 %v138, %v137
  %v205 = vpack.c.bf16 %v140, %v139
  %v206 = vpack.c.bf16 %v142, %v141
  %v207 = vld [vmem:[%s1] sm:$0xf]
  %v208 = vld [vmem:[%s1 + $0x4] sm:$0xf]
  %v209 = vld [vmem:[%s1 + $0x8] sm:$0xf]
  %v210 = vld [vmem:[%s1 + $0xc] sm:$0x3]
  %v211 = vld [vmem:[%s2] sm:$0x1]
  %v213 = vlaneseq
  %v214 = vshrl.u32 %v213, 7
  %v215 = vsub.s32 0, %v214
  %v216 = vrot.slane %v211, %v215
  %v222 = vunpack.c.l.b16 %v207
  %v223 = vunpack.c.l.b16 %v208
  %v224 = vunpack.c.l.b16 %v209
  %v225 = vunpack.c.l.b16 %v210
  %v226 = vpack.c.b16 %v223, %v222
  %v227 = vpack.c.b16 %v225, %v224
  %vm229 = vcmask 220160
  %v231 = vsel %vm229, %v143, 0
  %v234 = vsel %vm229, %v144, 0
  %v237 = vsel %vm229, %v145, 0
  %v240 = vsel %vm229, %v146, 0
  %v243 = vsel %vm229, %v147, 0
  %v246 = vsel %vm229, %v148, 0
  %v249 = vsel %vm229, %v149, 0
  %v252 = vsel %vm229, %v150, 0
  %v255 = vsel %vm229, %v151, 0
  %v258 = vsel %vm229, %v152, 0
  %v261 = vsel %vm229, %v153, 0
  %v264 = vsel %vm229, %v154, 0
  %v267 = vsel %vm229, %v155, 0
  %v270 = vsel %vm229, %v156, 0
  %v273 = vsel %vm229, %v157, 0
  %v276 = vsel %vm229, %v158, 0
  %v279 = vsel %vm229, %v159, 0
  %v282 = vsel %vm229, %v160, 0
  %v285 = vsel %vm229, %v161, 0
  %v288 = vsel %vm229, %v162, 0
  %v291 = vsel %vm229, %v163, 0
  %v294 = vsel %vm229, %v164, 0
  %v297 = vsel %vm229, %v165, 0
  %v300 = vsel %vm229, %v166, 0
  %v303 = vsel %vm229, %v167, 0
  %v306 = vsel %vm229, %v168, 0
  %v309 = vsel %vm229, %v169, 0
  %v312 = vsel %vm229, %v170, 0
  %v315 = vsel %vm229, %v171, 0
  %v318 = vsel %vm229, %v172, 0
  %v321 = vsel %vm229, %v173, 0
  %v324 = vsel %vm229, %v174, 0
  %v327 = vsel %vm229, %v175, 0
  %v330 = vsel %vm229, %v176, 0
  %v333 = vsel %vm229, %v177, 0
  %v336 = vsel %vm229, %v178, 0
  %v339 = vsel %vm229, %v179, 0
  %v342 = vsel %vm229, %v180, 0
  %v345 = vsel %vm229, %v181, 0
  %v348 = vsel %vm229, %v182, 0
  %v351 = vsel %vm229, %v183, 0
  %v354 = vsel %vm229, %v184, 0
  %v357 = vsel %vm229, %v185, 0
  %v360 = vsel %vm229, %v186, 0
  %v363 = vsel %vm229, %v187, 0
  %v366 = vsel %vm229, %v188, 0
  %v369 = vsel %vm229, %v189, 0
  %v372 = vsel %vm229, %v190, 0
  %v375 = vsel %vm229, %v191, 0
  %v378 = vsel %vm229, %v192, 0
  %v381 = vsel %vm229, %v193, 0
  %v384 = vsel %vm229, %v194, 0
  %v387 = vsel %vm229, %v195, 0
  %v390 = vsel %vm229, %v196, 0
  %v393 = vsel %vm229, %v197, 0
  %v396 = vsel %vm229, %v198, 0
  %v399 = vsel %vm229, %v199, 0
  %v402 = vsel %vm229, %v200, 0
  %v405 = vsel %vm229, %v201, 0
  %v408 = vsel %vm229, %v202, 0
  %v411 = vsel %vm229, %v203, 0
  %v414 = vsel %vm229, %v204, 0
  %v417 = vsel %vm229, %v205, 0
  %v420 = vsel %vm229, %v206, 0
  %vm422 = vcmask 1044480
  %vm423 = vcmask 1045504
  %v424 = vsel %vm422, 4294967295, 65535
  %v425 = vsel %vm423, %v424, 0
  %v427 = vand.u32 %v227, %v425
  %429 = vmatprep.subr.bf16.mxu0 0
  %430 = vmatpush1.bf16.msra.mxu0 0
  %431 = vmatprep.subr.bf16.mxu0 0
  %432 = vmatpush1.bf16.msra.mxu0 0
  %433 = vmatprep.subr.bf16.mxu0 0
  %434 = vmatpush1.bf16.msra.mxu0 0
  %435 = vmatprep.subr.bf16.mxu0 0
  %436 = vmatpush1.bf16.msra.mxu0 0
  %437 = vmatprep.subr.bf16.mxu0 0
  %438 = vmatpush1.bf16.msra.mxu0 0
  %439 = vmatprep.subr.bf16.mxu0 0
  %440 = vmatpush1.bf16.msra.mxu0 0
  %441 = vmatprep.subr.bf16.mxu0 0
  %442 = vmatpush1.bf16.msra.mxu0 %v427
  %443 = vmatprep.subr.bf16.mxu0 0
  %444 = vmatpush1.bf16.msra.mxu0 %v226
  %445 = vmatprep.subr.bf16.mxu0 0
  %446 = vmatpush2.bf16.msra.mxu0 0
  %447 = vmatprep.subr.bf16.mxu0 0
  %448 = vmatpush2.bf16.msra.mxu0 0
  %449 = vmatprep.subr.bf16.mxu0 0
  %450 = vmatpush2.bf16.msra.mxu0 0
  %451 = vmatprep.subr.bf16.mxu0 0
  %452 = vmatpush2.bf16.msra.mxu0 0
  %453 = vmatprep.subr.bf16.mxu0 0
  %454 = vmatpush2.bf16.msra.mxu0 0
  %455 = vmatprep.subr.bf16.mxu0 0
  %456 = vmatpush2.bf16.msra.mxu0 0
  %457 = vmatprep.subr.bf16.mxu0 0
  %458 = vmatpush2.bf16.msra.mxu0 0
  %459 = vmatprep.subr.bf16.mxu0 0
  %460 = vmatpush2.bf16.msra.mxu0 0
  %461 = vmatprep.mubr.bf16.mxu0 0
  %462 = vmatmul.mubr.bf16.gmra.mxu0 %v231
  %v463 = vpop.f32.mrf.mxu0
  %v464 = vadd.f32 %v216, %v463
  %v465 = vpop.f32.mrf.mxu0
  %v466 = vpop.f32.mrf.mxu0
  %v467 = vadd.f32 %v216, %v466
  %v468 = vpop.f32.mrf.mxu0
  %469 = vmatprep.mubr.bf16.mxu0 0
  %470 = vmatmul.mubr.bf16.gmra.mxu0 %v234
  %v471 = vpop.f32.mrf.mxu0
  %v472 = vadd.f32 %v216, %v471
  %v473 = vpop.f32.mrf.mxu0
  %v474 = vpop.f32.mrf.mxu0
  %v475 = vadd.f32 %v216, %v474
  %v476 = vpop.f32.mrf.mxu0
  %477 = vmatprep.mubr.bf16.mxu0 0
  %478 = vmatmul.mubr.bf16.gmra.mxu0 %v237
  %v479 = vpop.f32.mrf.mxu0
  %v480 = vadd.f32 %v216, %v479
  %v481 = vpop.f32.mrf.mxu0
  %v482 = vpop.f32.mrf.mxu0
  %v483 = vadd.f32 %v216, %v482
  %v484 = vpop.f32.mrf.mxu0
  %485 = vmatprep.mubr.bf16.mxu0 0
  %486 = vmatmul.mubr.bf16.gmra.mxu0 %v240
  %v487 = vpop.f32.mrf.mxu0
  %v488 = vadd.f32 %v216, %v487
  %v489 = vpop.f32.mrf.mxu0
  %v490 = vpop.f32.mrf.mxu0
  %v491 = vadd.f32 %v216, %v490
  %v492 = vpop.f32.mrf.mxu0
  %493 = vmatprep.mubr.bf16.mxu0 0
  %494 = vmatmul.mubr.bf16.gmra.mxu0 %v243
  %v495 = vpop.f32.mrf.mxu0
  %v496 = vadd.f32 %v216, %v495
  %v497 = vpop.f32.mrf.mxu0
  %v498 = vpop.f32.mrf.mxu0
  %v499 = vadd.f32 %v216, %v498
  %v500 = vpop.f32.mrf.mxu0
  %501 = vmatprep.mubr.bf16.mxu0 0
  %502 = vmatmul.mubr.bf16.gmra.mxu0 %v246
  %v503 = vpop.f32.mrf.mxu0
  %v504 = vadd.f32 %v216, %v503
  %v505 = vpop.f32.mrf.mxu0
  %v506 = vpop.f32.mrf.mxu0
  %v507 = vadd.f32 %v216, %v506
  %v508 = vpop.f32.mrf.mxu0
  %509 = vmatprep.mubr.bf16.mxu0 0
  %510 = vmatmul.mubr.bf16.gmra.mxu0 %v249
  %v511 = vpop.f32.mrf.mxu0
  %v512 = vadd.f32 %v216, %v511
  %v513 = vpop.f32.mrf.mxu0
  %v514 = vpop.f32.mrf.mxu0
  %v515 = vadd.f32 %v216, %v514
  %v516 = vpop.f32.mrf.mxu0
  %517 = vmatprep.mubr.bf16.mxu0 0
  %518 = vmatmul.mubr.bf16.gmra.mxu0 %v252
  %v519 = vpop.f32.mrf.mxu0
  %v520 = vadd.f32 %v216, %v519
  %v521 = vpop.f32.mrf.mxu0
  %v522 = vpop.f32.mrf.mxu0
  %v523 = vadd.f32 %v216, %v522
  %v524 = vpop.f32.mrf.mxu0
  %525 = vmatprep.mubr.bf16.mxu0 0
  %526 = vmatmul.mubr.bf16.gmra.mxu0 %v255
  %v527 = vpop.f32.mrf.mxu0
  %v528 = vadd.f32 %v216, %v527
  %v529 = vpop.f32.mrf.mxu0
  %v530 = vpop.f32.mrf.mxu0
  %v531 = vadd.f32 %v216, %v530
  %v532 = vpop.f32.mrf.mxu0
  %533 = vmatprep.mubr.bf16.mxu0 0
  %534 = vmatmul.mubr.bf16.gmra.mxu0 %v258
  %v535 = vpop.f32.mrf.mxu0
  %v536 = vadd.f32 %v216, %v535
  %v537 = vpop.f32.mrf.mxu0
  %v538 = vpop.f32.mrf.mxu0
  %v539 = vadd.f32 %v216, %v538
  %v540 = vpop.f32.mrf.mxu0
  %541 = vmatprep.mubr.bf16.mxu0 0
  %542 = vmatmul.mubr.bf16.gmra.mxu0 %v261
  %v543 = vpop.f32.mrf.mxu0
  %v544 = vadd.f32 %v216, %v543
  %v545 = vpop.f32.mrf.mxu0
  %v546 = vpop.f32.mrf.mxu0
  %v547 = vadd.f32 %v216, %v546
  %v548 = vpop.f32.mrf.mxu0
  %549 = vmatprep.mubr.bf16.mxu0 0
  %550 = vmatmul.mubr.bf16.gmra.mxu0 %v264
  %v551 = vpop.f32.mrf.mxu0
  %v552 = vadd.f32 %v216, %v551
  %v553 = vpop.f32.mrf.mxu0
  %v554 = vpop.f32.mrf.mxu0
  %v555 = vadd.f32 %v216, %v554
  %v556 = vpop.f32.mrf.mxu0
  %557 = vmatprep.mubr.bf16.mxu0 0
  %558 = vmatmul.mubr.bf16.gmra.mxu0 %v267
  %v559 = vpop.f32.mrf.mxu0
  %v560 = vadd.f32 %v216, %v559
  %v561 = vpop.f32.mrf.mxu0
  %v562 = vpop.f32.mrf.mxu0
  %v563 = vadd.f32 %v216, %v562
  %v564 = vpop.f32.mrf.mxu0
  %565 = vmatprep.mubr.bf16.mxu0 0
  %566 = vmatmul.mubr.bf16.gmra.mxu0 %v270
  %v567 = vpop.f32.mrf.mxu0
  %v568 = vadd.f32 %v216, %v567
  %v569 = vpop.f32.mrf.mxu0
  %v570 = vpop.f32.mrf.mxu0
  %v571 = vadd.f32 %v216, %v570
  %v572 = vpop.f32.mrf.mxu0
  %573 = vmatprep.mubr.bf16.mxu0 0
  %574 = vmatmul.mubr.bf16.gmra.mxu0 %v273
  %v575 = vpop.f32.mrf.mxu0
  %v576 = vadd.f32 %v216, %v575
  %v577 = vpop.f32.mrf.mxu0
  %v578 = vpop.f32.mrf.mxu0
  %v579 = vadd.f32 %v216, %v578
  %v580 = vpop.f32.mrf.mxu0
  %581 = vmatprep.mubr.bf16.mxu0 0
  %582 = vmatmul.mubr.bf16.gmra.mxu0 %v276
  %v583 = vpop.f32.mrf.mxu0
  %v584 = vadd.f32 %v216, %v583
  %v585 = vpop.f32.mrf.mxu0
  %v586 = vpop.f32.mrf.mxu0
  %v587 = vadd.f32 %v216, %v586
  %v588 = vpop.f32.mrf.mxu0
  %589 = vmatprep.mubr.bf16.mxu0 0
  %590 = vmatmul.mubr.bf16.gmra.mxu0 %v279
  %v591 = vpop.f32.mrf.mxu0
  %v592 = vadd.f32 %v216, %v591
  %v593 = vpop.f32.mrf.mxu0
  %v594 = vpop.f32.mrf.mxu0
  %v595 = vadd.f32 %v216, %v594
  %v596 = vpop.f32.mrf.mxu0
  %597 = vmatprep.mubr.bf16.mxu0 0
  %598 = vmatmul.mubr.bf16.gmra.mxu0 %v282
  %v599 = vpop.f32.mrf.mxu0
  %v600 = vadd.f32 %v216, %v599
  %v601 = vpop.f32.mrf.mxu0
  %v602 = vpop.f32.mrf.mxu0
  %v603 = vadd.f32 %v216, %v602
  %v604 = vpop.f32.mrf.mxu0
  %605 = vmatprep.mubr.bf16.mxu0 0
  %606 = vmatmul.mubr.bf16.gmra.mxu0 %v285
  %v607 = vpop.f32.mrf.mxu0
  %v608 = vadd.f32 %v216, %v607
  %v609 = vpop.f32.mrf.mxu0
  %v610 = vpop.f32.mrf.mxu0
  %v611 = vadd.f32 %v216, %v610
  %v612 = vpop.f32.mrf.mxu0
  %613 = vmatprep.mubr.bf16.mxu0 0
  %614 = vmatmul.mubr.bf16.gmra.mxu0 %v288
  %v615 = vpop.f32.mrf.mxu0
  %v616 = vadd.f32 %v216, %v615
  %v617 = vpop.f32.mrf.mxu0
  %v618 = vpop.f32.mrf.mxu0
  %v619 = vadd.f32 %v216, %v618
  %v620 = vpop.f32.mrf.mxu0
  %621 = vmatprep.mubr.bf16.mxu0 0
  %622 = vmatmul.mubr.bf16.gmra.mxu0 %v291
  %v623 = vpop.f32.mrf.mxu0
  %v624 = vadd.f32 %v216, %v623
  %v625 = vpop.f32.mrf.mxu0
  %v626 = vpop.f32.mrf.mxu0
  %v627 = vadd.f32 %v216, %v626
  %v628 = vpop.f32.mrf.mxu0
  %629 = vmatprep.mubr.bf16.mxu0 0
  %630 = vmatmul.mubr.bf16.gmra.mxu0 %v294
  %v631 = vpop.f32.mrf.mxu0
  %v632 = vadd.f32 %v216, %v631
  %v633 = vpop.f32.mrf.mxu0
  %v634 = vpop.f32.mrf.mxu0
  %v635 = vadd.f32 %v216, %v634
  %v636 = vpop.f32.mrf.mxu0
  %637 = vmatprep.mubr.bf16.mxu0 0
  %638 = vmatmul.mubr.bf16.gmra.mxu0 %v297
  %v639 = vpop.f32.mrf.mxu0
  %v640 = vadd.f32 %v216, %v639
  %v641 = vpop.f32.mrf.mxu0
  %v642 = vpop.f32.mrf.mxu0
  %v643 = vadd.f32 %v216, %v642
  %v644 = vpop.f32.mrf.mxu0
  %645 = vmatprep.mubr.bf16.mxu0 0
  %646 = vmatmul.mubr.bf16.gmra.mxu0 %v300
  %v647 = vpop.f32.mrf.mxu0
  %v648 = vadd.f32 %v216, %v647
  %v649 = vpop.f32.mrf.mxu0
  %v650 = vpop.f32.mrf.mxu0
  %v651 = vadd.f32 %v216, %v650
  %v652 = vpop.f32.mrf.mxu0
  %653 = vmatprep.mubr.bf16.mxu0 0
  %654 = vmatmul.mubr.bf16.gmra.mxu0 %v303
  %v655 = vpop.f32.mrf.mxu0
  %v656 = vadd.f32 %v216, %v655
  %v657 = vpop.f32.mrf.mxu0
  %v658 = vpop.f32.mrf.mxu0
  %v659 = vadd.f32 %v216, %v658
  %v660 = vpop.f32.mrf.mxu0
  %661 = vmatprep.mubr.bf16.mxu0 0
  %662 = vmatmul.mubr.bf16.gmra.mxu0 %v306
  %v663 = vpop.f32.mrf.mxu0
  %v664 = vadd.f32 %v216, %v663
  %v665 = vpop.f32.mrf.mxu0
  %v666 = vpop.f32.mrf.mxu0
  %v667 = vadd.f32 %v216, %v666
  %v668 = vpop.f32.mrf.mxu0
  %669 = vmatprep.mubr.bf16.mxu0 0
  %670 = vmatmul.mubr.bf16.gmra.mxu0 %v309
  %v671 = vpop.f32.mrf.mxu0
  %v672 = vadd.f32 %v216, %v671
  %v673 = vpop.f32.mrf.mxu0
  %v674 = vpop.f32.mrf.mxu0
  %v675 = vadd.f32 %v216, %v674
  %v676 = vpop.f32.mrf.mxu0
  %677 = vmatprep.mubr.bf16.mxu0 0
  %678 = vmatmul.mubr.bf16.gmra.mxu0 %v312
  %v679 = vpop.f32.mrf.mxu0
  %v680 = vadd.f32 %v216, %v679
  %v681 = vpop.f32.mrf.mxu0
  %v682 = vpop.f32.mrf.mxu0
  %v683 = vadd.f32 %v216, %v682
  %v684 = vpop.f32.mrf.mxu0
  %685 = vmatprep.mubr.bf16.mxu0 0
  %686 = vmatmul.mubr.bf16.gmra.mxu0 %v315
  %v687 = vpop.f32.mrf.mxu0
  %v688 = vadd.f32 %v216, %v687
  %v689 = vpop.f32.mrf.mxu0
  %v690 = vpop.f32.mrf.mxu0
  %v691 = vadd.f32 %v216, %v690
  %v692 = vpop.f32.mrf.mxu0
  %693 = vmatprep.mubr.bf16.mxu0 0
  %694 = vmatmul.mubr.bf16.gmra.mxu0 %v318
  %v695 = vpop.f32.mrf.mxu0
  %v696 = vadd.f32 %v216, %v695
  %v697 = vpop.f32.mrf.mxu0
  %v698 = vpop.f32.mrf.mxu0
  %v699 = vadd.f32 %v216, %v698
  %v700 = vpop.f32.mrf.mxu0
  %701 = vmatprep.mubr.bf16.mxu0 0
  %702 = vmatmul.mubr.bf16.gmra.mxu0 %v321
  %v703 = vpop.f32.mrf.mxu0
  %v704 = vadd.f32 %v216, %v703
  %v705 = vpop.f32.mrf.mxu0
  %v706 = vpop.f32.mrf.mxu0
  %v707 = vadd.f32 %v216, %v706
  %v708 = vpop.f32.mrf.mxu0
  %709 = vmatprep.mubr.bf16.mxu0 0
  %710 = vmatmul.mubr.bf16.gmra.mxu0 %v324
  %v711 = vpop.f32.mrf.mxu0
  %v712 = vadd.f32 %v216, %v711
  %v713 = vpop.f32.mrf.mxu0
  %v714 = vpop.f32.mrf.mxu0
  %v715 = vadd.f32 %v216, %v714
  %v716 = vpop.f32.mrf.mxu0
  %717 = vmatprep.mubr.bf16.mxu0 0
  %718 = vmatmul.mubr.bf16.gmra.mxu0 %v327
  %v719 = vpop.f32.mrf.mxu0
  %v720 = vadd.f32 %v216, %v719
  %v721 = vpop.f32.mrf.mxu0
  %v722 = vpop.f32.mrf.mxu0
  %v723 = vadd.f32 %v216, %v722
  %v724 = vpop.f32.mrf.mxu0
  %725 = vmatprep.mubr.bf16.mxu0 0
  %726 = vmatmul.mubr.bf16.gmra.mxu0 %v330
  %v727 = vpop.f32.mrf.mxu0
  %v728 = vadd.f32 %v216, %v727
  %v729 = vpop.f32.mrf.mxu0
  %v730 = vpop.f32.mrf.mxu0
  %v731 = vadd.f32 %v216, %v730
  %v732 = vpop.f32.mrf.mxu0
  %733 = vmatprep.mubr.bf16.mxu0 0
  %734 = vmatmul.mubr.bf16.gmra.mxu0 %v333
  %v735 = vpop.f32.mrf.mxu0
  %v736 = vadd.f32 %v216, %v735
  %v737 = vpop.f32.mrf.mxu0
  %v738 = vpop.f32.mrf.mxu0
  %v739 = vadd.f32 %v216, %v738
  %v740 = vpop.f32.mrf.mxu0
  %741 = vmatprep.mubr.bf16.mxu0 0
  %742 = vmatmul.mubr.bf16.gmra.mxu0 %v336
  %v743 = vpop.f32.mrf.mxu0
  %v744 = vadd.f32 %v216, %v743
  %v745 = vpop.f32.mrf.mxu0
  %v746 = vpop.f32.mrf.mxu0
  %v747 = vadd.f32 %v216, %v746
  %v748 = vpop.f32.mrf.mxu0
  %749 = vmatprep.mubr.bf16.mxu0 0
  %750 = vmatmul.mubr.bf16.gmra.mxu0 %v339
  %v751 = vpop.f32.mrf.mxu0
  %v752 = vadd.f32 %v216, %v751
  %v753 = vpop.f32.mrf.mxu0
  %v754 = vpop.f32.mrf.mxu0
  %v755 = vadd.f32 %v216, %v754
  %v756 = vpop.f32.mrf.mxu0
  %757 = vmatprep.mubr.bf16.mxu0 0
  %758 = vmatmul.mubr.bf16.gmra.mxu0 %v342
  %v759 = vpop.f32.mrf.mxu0
  %v760 = vadd.f32 %v216, %v759
  %v761 = vpop.f32.mrf.mxu0
  %v762 = vpop.f32.mrf.mxu0
  %v763 = vadd.f32 %v216, %v762
  %v764 = vpop.f32.mrf.mxu0
  %765 = vmatprep.mubr.bf16.mxu0 0
  %766 = vmatmul.mubr.bf16.gmra.mxu0 %v345
  %v767 = vpop.f32.mrf.mxu0
  %v768 = vadd.f32 %v216, %v767
  %v769 = vpop.f32.mrf.mxu0
  %v770 = vpop.f32.mrf.mxu0
  %v771 = vadd.f32 %v216, %v770
  %v772 = vpop.f32.mrf.mxu0
  %773 = vmatprep.mubr.bf16.mxu0 0
  %774 = vmatmul.mubr.bf16.gmra.mxu0 %v348
  %v775 = vpop.f32.mrf.mxu0
  %v776 = vadd.f32 %v216, %v775
  %v777 = vpop.f32.mrf.mxu0
  %v778 = vpop.f32.mrf.mxu0
  %v779 = vadd.f32 %v216, %v778
  %v780 = vpop.f32.mrf.mxu0
  %781 = vmatprep.mubr.bf16.mxu0 0
  %782 = vmatmul.mubr.bf16.gmra.mxu0 %v351
  %v783 = vpop.f32.mrf.mxu0
  %v784 = vadd.f32 %v216, %v783
  %v785 = vpop.f32.mrf.mxu0
  %v786 = vpop.f32.mrf.mxu0
  %v787 = vadd.f32 %v216, %v786
  %v788 = vpop.f32.mrf.mxu0
  %789 = vmatprep.mubr.bf16.mxu0 0
  %790 = vmatmul.mubr.bf16.gmra.mxu0 %v354
  %v791 = vpop.f32.mrf.mxu0
  %v792 = vadd.f32 %v216, %v791
  %v793 = vpop.f32.mrf.mxu0
  %v794 = vpop.f32.mrf.mxu0
  %v795 = vadd.f32 %v216, %v794
  %v796 = vpop.f32.mrf.mxu0
  %797 = vmatprep.mubr.bf16.mxu0 0
  %798 = vmatmul.mubr.bf16.gmra.mxu0 %v357
  %v799 = vpop.f32.mrf.mxu0
  %v800 = vadd.f32 %v216, %v799
  %v801 = vpop.f32.mrf.mxu0
  %v802 = vpop.f32.mrf.mxu0
  %v803 = vadd.f32 %v216, %v802
  %v804 = vpop.f32.mrf.mxu0
  %805 = vmatprep.mubr.bf16.mxu0 0
  %806 = vmatmul.mubr.bf16.gmra.mxu0 %v360
  %v807 = vpop.f32.mrf.mxu0
  %v808 = vadd.f32 %v216, %v807
  %v809 = vpop.f32.mrf.mxu0
  %v810 = vpop.f32.mrf.mxu0
  %v811 = vadd.f32 %v216, %v810
  %v812 = vpop.f32.mrf.mxu0
  %813 = vmatprep.mubr.bf16.mxu0 0
  %814 = vmatmul.mubr.bf16.gmra.mxu0 %v363
  %v815 = vpop.f32.mrf.mxu0
  %v816 = vadd.f32 %v216, %v815
  %v817 = vpop.f32.mrf.mxu0
  %v818 = vpop.f32.mrf.mxu0
  %v819 = vadd.f32 %v216, %v818
  %v820 = vpop.f32.mrf.mxu0
  %821 = vmatprep.mubr.bf16.mxu0 0
  %822 = vmatmul.mubr.bf16.gmra.mxu0 %v366
  %v823 = vpop.f32.mrf.mxu0
  %v824 = vadd.f32 %v216, %v823
  %v825 = vpop.f32.mrf.mxu0
  %v826 = vpop.f32.mrf.mxu0
  %v827 = vadd.f32 %v216, %v826
  %v828 = vpop.f32.mrf.mxu0
  %829 = vmatprep.mubr.bf16.mxu0 0
  %830 = vmatmul.mubr.bf16.gmra.mxu0 %v369
  %v831 = vpop.f32.mrf.mxu0
  %v832 = vadd.f32 %v216, %v831
  %v833 = vpop.f32.mrf.mxu0
  %v834 = vpop.f32.mrf.mxu0
  %v835 = vadd.f32 %v216, %v834
  %v836 = vpop.f32.mrf.mxu0
  %837 = vmatprep.mubr.bf16.mxu0 0
  %838 = vmatmul.mubr.bf16.gmra.mxu0 %v372
  %v839 = vpop.f32.mrf.mxu0
  %v840 = vadd.f32 %v216, %v839
  %v841 = vpop.f32.mrf.mxu0
  %v842 = vpop.f32.mrf.mxu0
  %v843 = vadd.f32 %v216, %v842
  %v844 = vpop.f32.mrf.mxu0
  %845 = vmatprep.mubr.bf16.mxu0 0
  %846 = vmatmul.mubr.bf16.gmra.mxu0 %v375
  %v847 = vpop.f32.mrf.mxu0
  %v848 = vadd.f32 %v216, %v847
  %v849 = vpop.f32.mrf.mxu0
  %v850 = vpop.f32.mrf.mxu0
  %v851 = vadd.f32 %v216, %v850
  %v852 = vpop.f32.mrf.mxu0
  %853 = vmatprep.mubr.bf16.mxu0 0
  %854 = vmatmul.mubr.bf16.gmra.mxu0 %v378
  %v855 = vpop.f32.mrf.mxu0
  %v856 = vadd.f32 %v216, %v855
  %v857 = vpop.f32.mrf.mxu0
  %v858 = vpop.f32.mrf.mxu0
  %v859 = vadd.f32 %v216, %v858
  %v860 = vpop.f32.mrf.mxu0
  %861 = vmatprep.mubr.bf16.mxu0 0
  %862 = vmatmul.mubr.bf16.gmra.mxu0 %v381
  %v863 = vpop.f32.mrf.mxu0
  %v864 = vadd.f32 %v216, %v863
  %v865 = vpop.f32.mrf.mxu0
  %v866 = vpop.f32.mrf.mxu0
  %v867 = vadd.f32 %v216, %v866
  %v868 = vpop.f32.mrf.mxu0
  %869 = vmatprep.mubr.bf16.mxu0 0
  %870 = vmatmul.mubr.bf16.gmra.mxu0 %v384
  %v871 = vpop.f32.mrf.mxu0
  %v872 = vadd.f32 %v216, %v871
  %v873 = vpop.f32.mrf.mxu0
  %v874 = vpop.f32.mrf.mxu0
  %v875 = vadd.f32 %v216, %v874
  %v876 = vpop.f32.mrf.mxu0
  %877 = vmatprep.mubr.bf16.mxu0 0
  %878 = vmatmul.mubr.bf16.gmra.mxu0 %v387
  %v879 = vpop.f32.mrf.mxu0
  %v880 = vadd.f32 %v216, %v879
  %v881 = vpop.f32.mrf.mxu0
  %v882 = vpop.f32.mrf.mxu0
  %v883 = vadd.f32 %v216, %v882
  %v884 = vpop.f32.mrf.mxu0
  %885 = vmatprep.mubr.bf16.mxu0 0
  %886 = vmatmul.mubr.bf16.gmra.mxu0 %v390
  %v887 = vpop.f32.mrf.mxu0
  %v888 = vadd.f32 %v216, %v887
  %v889 = vpop.f32.mrf.mxu0
  %v890 = vpop.f32.mrf.mxu0
  %v891 = vadd.f32 %v216, %v890
  %v892 = vpop.f32.mrf.mxu0
  %893 = vmatprep.mubr.bf16.mxu0 0
  %894 = vmatmul.mubr.bf16.gmra.mxu0 %v393
  %v895 = vpop.f32.mrf.mxu0
  %v896 = vadd.f32 %v216, %v895
  %v897 = vpop.f32.mrf.mxu0
  %v898 = vpop.f32.mrf.mxu0
  %v899 = vadd.f32 %v216, %v898
  %v900 = vpop.f32.mrf.mxu0
  %901 = vmatprep.mubr.bf16.mxu0 0
  %902 = vmatmul.mubr.bf16.gmra.mxu0 %v396
  %v903 = vpop.f32.mrf.mxu0
  %v904 = vadd.f32 %v216, %v903
  %v905 = vpop.f32.mrf.mxu0
  %v906 = vpop.f32.mrf.mxu0
  %v907 = vadd.f32 %v216, %v906
  %v908 = vpop.f32.mrf.mxu0
  %909 = vmatprep.mubr.bf16.mxu0 0
  %910 = vmatmul.mubr.bf16.gmra.mxu0 %v399
  %v911 = vpop.f32.mrf.mxu0
  %v912 = vadd.f32 %v216, %v911
  %v913 = vpop.f32.mrf.mxu0
  %v914 = vpop.f32.mrf.mxu0
  %v915 = vadd.f32 %v216, %v914
  %v916 = vpop.f32.mrf.mxu0
  %917 = vmatprep.mubr.bf16.mxu0 0
  %918 = vmatmul.mubr.bf16.gmra.mxu0 %v402
  %v919 = vpop.f32.mrf.mxu0
  %v920 = vadd.f32 %v216, %v919
  %v921 = vpop.f32.mrf.mxu0
  %v922 = vpop.f32.mrf.mxu0
  %v923 = vadd.f32 %v216, %v922
  %v924 = vpop.f32.mrf.mxu0
  %925 = vmatprep.mubr.bf16.mxu0 0
  %926 = vmatmul.mubr.bf16.gmra.mxu0 %v405
  %v927 = vpop.f32.mrf.mxu0
  %v928 = vadd.f32 %v216, %v927
  %v929 = vpop.f32.mrf.mxu0
  %v930 = vpop.f32.mrf.mxu0
  %v931 = vadd.f32 %v216, %v930
  %v932 = vpop.f32.mrf.mxu0
  %933 = vmatprep.mubr.bf16.mxu0 0
  %934 = vmatmul.mubr.bf16.gmra.mxu0 %v408
  %v935 = vpop.f32.mrf.mxu0
  %v936 = vadd.f32 %v216, %v935
  %v937 = vpop.f32.mrf.mxu0
  %v938 = vpop.f32.mrf.mxu0
  %v939 = vadd.f32 %v216, %v938
  %v940 = vpop.f32.mrf.mxu0
  %941 = vmatprep.mubr.bf16.mxu0 0
  %942 = vmatmul.mubr.bf16.gmra.mxu0 %v411
  %v943 = vpop.f32.mrf.mxu0
  %v944 = vadd.f32 %v216, %v943
  %v945 = vpop.f32.mrf.mxu0
  %v946 = vpop.f32.mrf.mxu0
  %v947 = vadd.f32 %v216, %v946
  %v948 = vpop.f32.mrf.mxu0
  %949 = vmatprep.mubr.bf16.mxu0 0
  %950 = vmatmul.mubr.bf16.gmra.mxu0 %v414
  %v951 = vpop.f32.mrf.mxu0
  %v952 = vadd.f32 %v216, %v951
  %v953 = vpop.f32.mrf.mxu0
  %v954 = vpop.f32.mrf.mxu0
  %v955 = vadd.f32 %v216, %v954
  %v956 = vpop.f32.mrf.mxu0
  %957 = vmatprep.mubr.bf16.mxu0 0
  %958 = vmatmul.mubr.bf16.gmra.mxu0 %v417
  %v959 = vpop.f32.mrf.mxu0
  %v960 = vadd.f32 %v216, %v959
  %v961 = vpop.f32.mrf.mxu0
  %v962 = vpop.f32.mrf.mxu0
  %v963 = vadd.f32 %v216, %v962
  %v964 = vpop.f32.mrf.mxu0
  %965 = vmatprep.mubr.bf16.mxu0 0
  %966 = vmatmul.mubr.bf16.gmra.mxu0 %v420
  %v967 = vpop.f32.mrf.mxu0
  %v968 = vadd.f32 %v216, %v967
  %v969 = vpop.f32.mrf.mxu0
  %v970 = vpop.f32.mrf.mxu0
  %v971 = vadd.f32 %v216, %v970
  %v972 = vpop.f32.mrf.mxu0
  %973 = vdwg.mxu0
  %v974 = vadd.f32 %v464, 3.0
  %v975 = vadd.f32 %v467, 3.0
  %v976 = vadd.f32 %v472, 3.0
  %v977 = vadd.f32 %v475, 3.0
  %v978 = vadd.f32 %v480, 3.0
  %v979 = vadd.f32 %v483, 3.0
  %v980 = vadd.f32 %v488, 3.0
  %v981 = vadd.f32 %v491, 3.0
  %v982 = vadd.f32 %v496, 3.0
  %v983 = vadd.f32 %v499, 3.0
  %v984 = vadd.f32 %v504, 3.0
  %v985 = vadd.f32 %v507, 3.0
  %v986 = vadd.f32 %v512, 3.0
  %v987 = vadd.f32 %v515, 3.0
  %v988 = vadd.f32 %v520, 3.0
  %v989 = vadd.f32 %v523, 3.0
  %v990 = vadd.f32 %v528, 3.0
  %v991 = vadd.f32 %v531, 3.0
  %v992 = vadd.f32 %v536, 3.0
  %v993 = vadd.f32 %v539, 3.0
  %v994 = vadd.f32 %v544, 3.0
  %v995 = vadd.f32 %v547, 3.0
  %v996 = vadd.f32 %v552, 3.0
  %v997 = vadd.f32 %v555, 3.0
  %v998 = vadd.f32 %v560, 3.0
  %v999 = vadd.f32 %v563, 3.0
  %v1000 = vadd.f32 %v568, 3.0
  %v1001 = vadd.f32 %v571, 3.0
  %v1002 = vadd.f32 %v576, 3.0
  %v1003 = vadd.f32 %v579, 3.0
  %v1004 = vadd.f32 %v584, 3.0
  %v1005 = vadd.f32 %v587, 3.0
  %v1006 = vadd.f32 %v592, 3.0
  %v1007 = vadd.f32 %v595, 3.0
  %v1008 = vadd.f32 %v600, 3.0
  %v1009 = vadd.f32 %v603, 3.0
  %v1010 = vadd.f32 %v608, 3.0
  %v1011 = vadd.f32 %v611, 3.0
  %v1012 = vadd.f32 %v616, 3.0
  %v1013 = vadd.f32 %v619, 3.0
  %v1014 = vadd.f32 %v624, 3.0
  %v1015 = vadd.f32 %v627, 3.0
  %v1016 = vadd.f32 %v632, 3.0
  %v1017 = vadd.f32 %v635, 3.0
  %v1018 = vadd.f32 %v640, 3.0
  %v1019 = vadd.f32 %v643, 3.0
  %v1020 = vadd.f32 %v648, 3.0
  %v1021 = vadd.f32 %v651, 3.0
  %v1022 = vadd.f32 %v656, 3.0
  %v1023 = vadd.f32 %v659, 3.0
  %v1024 = vadd.f32 %v664, 3.0
  %v1025 = vadd.f32 %v667, 3.0
  %v1026 = vadd.f32 %v672, 3.0
  %v1027 = vadd.f32 %v675, 3.0
  %v1028 = vadd.f32 %v680, 3.0
  %v1029 = vadd.f32 %v683, 3.0
  %v1030 = vadd.f32 %v688, 3.0
  %v1031 = vadd.f32 %v691, 3.0
  %v1032 = vadd.f32 %v696, 3.0
  %v1033 = vadd.f32 %v699, 3.0
  %v1034 = vadd.f32 %v704, 3.0
  %v1035 = vadd.f32 %v707, 3.0
  %v1036 = vadd.f32 %v712, 3.0
  %v1037 = vadd.f32 %v715, 3.0
  %v1038 = vadd.f32 %v720, 3.0
  %v1039 = vadd.f32 %v723, 3.0
  %v1040 = vadd.f32 %v728, 3.0
  %v1041 = vadd.f32 %v731, 3.0
  %v1042 = vadd.f32 %v736, 3.0
  %v1043 = vadd.f32 %v739, 3.0
  %v1044 = vadd.f32 %v744, 3.0
  %v1045 = vadd.f32 %v747, 3.0
  %v1046 = vadd.f32 %v752, 3.0
  %v1047 = vadd.f32 %v755, 3.0
  %v1048 = vadd.f32 %v760, 3.0
  %v1049 = vadd.f32 %v763, 3.0
  %v1050 = vadd.f32 %v768, 3.0
  %v1051 = vadd.f32 %v771, 3.0
  %v1052 = vadd.f32 %v776, 3.0
  %v1053 = vadd.f32 %v779, 3.0
  %v1054 = vadd.f32 %v784, 3.0
  %v1055 = vadd.f32 %v787, 3.0
  %v1056 = vadd.f32 %v792, 3.0
  %v1057 = vadd.f32 %v795, 3.0
  %v1058 = vadd.f32 %v800, 3.0
  %v1059 = vadd.f32 %v803, 3.0
  %v1060 = vadd.f32 %v808, 3.0
  %v1061 = vadd.f32 %v811, 3.0
  %v1062 = vadd.f32 %v816, 3.0
  %v1063 = vadd.f32 %v819, 3.0
  %v1064 = vadd.f32 %v824, 3.0
  %v1065 = vadd.f32 %v827, 3.0
  %v1066 = vadd.f32 %v832, 3.0
  %v1067 = vadd.f32 %v835, 3.0
  %v1068 = vadd.f32 %v840, 3.0
  %v1069 = vadd.f32 %v843, 3.0
  %v1070 = vadd.f32 %v848, 3.0
  %v1071 = vadd.f32 %v851, 3.0
  %v1072 = vadd.f32 %v856, 3.0
  %v1073 = vadd.f32 %v859, 3.0
  %v1074 = vadd.f32 %v864, 3.0
  %v1075 = vadd.f32 %v867, 3.0
  %v1076 = vadd.f32 %v872, 3.0
  %v1077 = vadd.f32 %v875, 3.0
  %v1078 = vadd.f32 %v880, 3.0
  %v1079 = vadd.f32 %v883, 3.0
  %v1080 = vadd.f32 %v888, 3.0
  %v1081 = vadd.f32 %v891, 3.0
  %v1082 = vadd.f32 %v896, 3.0
  %v1083 = vadd.f32 %v899, 3.0
  %v1084 = vadd.f32 %v904, 3.0
  %v1085 = vadd.f32 %v907, 3.0
  %v1086 = vadd.f32 %v912, 3.0
  %v1087 = vadd.f32 %v915, 3.0
  %v1088 = vadd.f32 %v920, 3.0
  %v1089 = vadd.f32 %v923, 3.0
  %v1090 = vadd.f32 %v928, 3.0
  %v1091 = vadd.f32 %v931, 3.0
  %v1092 = vadd.f32 %v936, 3.0
  %v1093 = vadd.f32 %v939, 3.0
  %v1094 = vadd.f32 %v944, 3.0
  %v1095 = vadd.f32 %v947, 3.0
  %v1096 = vadd.f32 %v952, 3.0
  %v1097 = vadd.f32 %v955, 3.0
  %v1098 = vadd.f32 %v960, 3.0
  %v1099 = vadd.f32 %v963, 3.0
  %v1100 = vadd.f32 %v968, 3.0
  %v1101 = vadd.f32 %v971, 3.0
  %v1102 = vmax.f32 %v974, 0.0
  %v1103 = vmax.f32 %v975, 0.0
  %v1104 = vmax.f32 %v976, 0.0
  %v1105 = vmax.f32 %v977, 0.0
  %v1106 = vmax.f32 %v978, 0.0
  %v1107 = vmax.f32 %v979, 0.0
  %v1108 = vmax.f32 %v980, 0.0
  %v1109 = vmax.f32 %v981, 0.0
  %v1110 = vmax.f32 %v982, 0.0
  %v1111 = vmax.f32 %v983, 0.0
  %v1112 = vmax.f32 %v984, 0.0
  %v1113 = vmax.f32 %v985, 0.0
  %v1114 = vmax.f32 %v986, 0.0
  %v1115 = vmax.f32 %v987, 0.0
  %v1116 = vmax.f32 %v988, 0.0
  %v1117 = vmax.f32 %v989, 0.0
  %v1118 = vmax.f32 %v990, 0.0
  %v1119 = vmax.f32 %v991, 0.0
  %v1120 = vmax.f32 %v992, 0.0
  %v1121 = vmax.f32 %v993, 0.0
  %v1122 = vmax.f32 %v994, 0.0
  %v1123 = vmax.f32 %v995, 0.0
  %v1124 = vmax.f32 %v996, 0.0
  %v1125 = vmax.f32 %v997, 0.0
  %v1126 = vmax.f32 %v998, 0.0
  %v1127 = vmax.f32 %v999, 0.0
  %v1128 = vmax.f32 %v1000, 0.0
  %v1129 = vmax.f32 %v1001, 0.0
  %v1130 = vmax.f32 %v1002, 0.0
  %v1131 = vmax.f32 %v1003, 0.0
  %v1132 = vmax.f32 %v1004, 0.0
  %v1133 = vmax.f32 %v1005, 0.0
  %v1134 = vmax.f32 %v1006, 0.0
  %v1135 = vmax.f32 %v1007, 0.0
  %v1136 = vmax.f32 %v1008, 0.0
  %v1137 = vmax.f32 %v1009, 0.0
  %v1138 = vmax.f32 %v1010, 0.0
  %v1139 = vmax.f32 %v1011, 0.0
  %v1140 = vmax.f32 %v1012, 0.0
  %v1141 = vmax.f32 %v1013, 0.0
  %v1142 = vmax.f32 %v1014, 0.0
  %v1143 = vmax.f32 %v1015, 0.0
  %v1144 = vmax.f32 %v1016, 0.0
  %v1145 = vmax.f32 %v1017, 0.0
  %v1146 = vmax.f32 %v1018, 0.0
  %v1147 = vmax.f32 %v1019, 0.0
  %v1148 = vmax.f32 %v1020, 0.0
  %v1149 = vmax.f32 %v1021, 0.0
  %v1150 = vmax.f32 %v1022, 0.0
  %v1151 = vmax.f32 %v1023, 0.0
  %v1152 = vmax.f32 %v1024, 0.0
  %v1153 = vmax.f32 %v1025, 0.0
  %v1154 = vmax.f32 %v1026, 0.0
  %v1155 = vmax.f32 %v1027, 0.0
  %v1156 = vmax.f32 %v1028, 0.0
  %v1157 = vmax.f32 %v1029, 0.0
  %v1158 = vmax.f32 %v1030, 0.0
  %v1159 = vmax.f32 %v1031, 0.0
  %v1160 = vmax.f32 %v1032, 0.0
  %v1161 = vmax.f32 %v1033, 0.0
  %v1162 = vmax.f32 %v1034, 0.0
  %v1163 = vmax.f32 %v1035, 0.0
  %v1164 = vmax.f32 %v1036, 0.0
  %v1165 = vmax.f32 %v1037, 0.0
  %v1166 = vmax.f32 %v1038, 0.0
  %v1167 = vmax.f32 %v1039, 0.0
  %v1168 = vmax.f32 %v1040, 0.0
  %v1169 = vmax.f32 %v1041, 0.0
  %v1170 = vmax.f32 %v1042, 0.0
  %v1171 = vmax.f32 %v1043, 0.0
  %v1172 = vmax.f32 %v1044, 0.0
  %v1173 = vmax.f32 %v1045, 0.0
  %v1174 = vmax.f32 %v1046, 0.0
  %v1175 = vmax.f32 %v1047, 0.0
  %v1176 = vmax.f32 %v1048, 0.0
  %v1177 = vmax.f32 %v1049, 0.0
  %v1178 = vmax.f32 %v1050, 0.0
  %v1179 = vmax.f32 %v1051, 0.0
  %v1180 = vmax.f32 %v1052, 0.0
  %v1181 = vmax.f32 %v1053, 0.0
  %v1182 = vmax.f32 %v1054, 0.0
  %v1183 = vmax.f32 %v1055, 0.0
  %v1184 = vmax.f32 %v1056, 0.0
  %v1185 = vmax.f32 %v1057, 0.0
  %v1186 = vmax.f32 %v1058, 0.0
  %v1187 = vmax.f32 %v1059, 0.0
  %v1188 = vmax.f32 %v1060, 0.0
  %v1189 = vmax.f32 %v1061, 0.0
  %v1190 = vmax.f32 %v1062, 0.0
  %v1191 = vmax.f32 %v1063, 0.0
  %v1192 = vmax.f32 %v1064, 0.0
  %v1193 = vmax.f32 %v1065, 0.0
  %v1194 = vmax.f32 %v1066, 0.0
  %v1195 = vmax.f32 %v1067, 0.0
  %v1196 = vmax.f32 %v1068, 0.0
  %v1197 = vmax.f32 %v1069, 0.0
  %v1198 = vmax.f32 %v1070, 0.0
  %v1199 = vmax.f32 %v1071, 0.0
  %v1200 = vmax.f32 %v1072, 0.0
  %v1201 = vmax.f32 %v1073, 0.0
  %v1202 = vmax.f32 %v1074, 0.0
  %v1203 = vmax.f32 %v1075, 0.0
  %v1204 = vmax.f32 %v1076, 0.0
  %v1205 = vmax.f32 %v1077, 0.0
  %v1206 = vmax.f32 %v1078, 0.0
  %v1207 = vmax.f32 %v1079, 0.0
  %v1208 = vmax.f32 %v1080, 0.0
  %v1209 = vmax.f32 %v1081, 0.0
  %v1210 = vmax.f32 %v1082, 0.0
  %v1211 = vmax.f32 %v1083, 0.0
  %v1212 = vmax.f32 %v1084, 0.0
  %v1213 = vmax.f32 %v1085, 0.0
  %v1214 = vmax.f32 %v1086, 0.0
  %v1215 = vmax.f32 %v1087, 0.0
  %v1216 = vmax.f32 %v1088, 0.0
  %v1217 = vmax.f32 %v1089, 0.0
  %v1218 = vmax.f32 %v1090, 0.0
  %v1219 = vmax.f32 %v1091, 0.0
  %v1220 = vmax.f32 %v1092, 0.0
  %v1221 = vmax.f32 %v1093, 0.0
  %v1222 = vmax.f32 %v1094, 0.0
  %v1223 = vmax.f32 %v1095, 0.0
  %v1224 = vmax.f32 %v1096, 0.0
  %v1225 = vmax.f32 %v1097, 0.0
  %v1226 = vmax.f32 %v1098, 0.0
  %v1227 = vmax.f32 %v1099, 0.0
  %v1228 = vmax.f32 %v1100, 0.0
  %v1229 = vmax.f32 %v1101, 0.0
  %v1230 = vmin.f32 %v1102, 6.0
  %v1231 = vmin.f32 %v1103, 6.0
  %v1232 = vmin.f32 %v1104, 6.0
  %v1233 = vmin.f32 %v1105, 6.0
  %v1234 = vmin.f32 %v1106, 6.0
  %v1235 = vmin.f32 %v1107, 6.0
  %v1236 = vmin.f32 %v1108, 6.0
  %v1237 = vmin.f32 %v1109, 6.0
  %v1238 = vmin.f32 %v1110, 6.0
  %v1239 = vmin.f32 %v1111, 6.0
  %v1240 = vmin.f32 %v1112, 6.0
  %v1241 = vmin.f32 %v1113, 6.0
  %v1242 = vmin.f32 %v1114, 6.0
  %v1243 = vmin.f32 %v1115, 6.0
  %v1244 = vmin.f32 %v1116, 6.0
  %v1245 = vmin.f32 %v1117, 6.0
  %v1246 = vmin.f32 %v1118, 6.0
  %v1247 = vmin.f32 %v1119, 6.0
  %v1248 = vmin.f32 %v1120, 6.0
  %v1249 = vmin.f32 %v1121, 6.0
  %v1250 = vmin.f32 %v1122, 6.0
  %v1251 = vmin.f32 %v1123, 6.0
  %v1252 = vmin.f32 %v1124, 6.0
  %v1253 = vmin.f32 %v1125, 6.0
  %v1254 = vmin.f32 %v1126, 6.0
  %v1255 = vmin.f32 %v1127, 6.0
  %v1256 = vmin.f32 %v1128, 6.0
  %v1257 = vmin.f32 %v1129, 6.0
  %v1258 = vmin.f32 %v1130, 6.0
  %v1259 = vmin.f32 %v1131, 6.0
  %v1260 = vmin.f32 %v1132, 6.0
  %v1261 = vmin.f32 %v1133, 6.0
  %v1262 = vmin.f32 %v1134, 6.0
  %v1263 = vmin.f32 %v1135, 6.0
  %v1264 = vmin.f32 %v1136, 6.0
  %v1265 = vmin.f32 %v1137, 6.0
  %v1266 = vmin.f32 %v1138, 6.0
  %v1267 = vmin.f32 %v1139, 6.0
  %v1268 = vmin.f32 %v1140, 6.0
  %v1269 = vmin.f32 %v1141, 6.0
  %v1270 = vmin.f32 %v1142, 6.0
  %v1271 = vmin.f32 %v1143, 6.0
  %v1272 = vmin.f32 %v1144, 6.0
  %v1273 = vmin.f32 %v1145, 6.0
  %v1274 = vmin.f32 %v1146, 6.0
  %v1275 = vmin.f32 %v1147, 6.0
  %v1276 = vmin.f32 %v1148, 6.0
  %v1277 = vmin.f32 %v1149, 6.0
  %v1278 = vmin.f32 %v1150, 6.0
  %v1279 = vmin.f32 %v1151, 6.0
  %v1280 = vmin.f32 %v1152, 6.0
  %v1281 = vmin.f32 %v1153, 6.0
  %v1282 = vmin.f32 %v1154, 6.0
  %v1283 = vmin.f32 %v1155, 6.0
  %v1284 = vmin.f32 %v1156, 6.0
  %v1285 = vmin.f32 %v1157, 6.0
  %v1286 = vmin.f32 %v1158, 6.0
  %v1287 = vmin.f32 %v1159, 6.0
  %v1288 = vmin.f32 %v1160, 6.0
  %v1289 = vmin.f32 %v1161, 6.0
  %v1290 = vmin.f32 %v1162, 6.0
  %v1291 = vmin.f32 %v1163, 6.0
  %v1292 = vmin.f32 %v1164, 6.0
  %v1293 = vmin.f32 %v1165, 6.0
  %v1294 = vmin.f32 %v1166, 6.0
  %v1295 = vmin.f32 %v1167, 6.0
  %v1296 = vmin.f32 %v1168, 6.0
  %v1297 = vmin.f32 %v1169, 6.0
  %v1298 = vmin.f32 %v1170, 6.0
  %v1299 = vmin.f32 %v1171, 6.0
  %v1300 = vmin.f32 %v1172, 6.0
  %v1301 = vmin.f32 %v1173, 6.0
  %v1302 = vmin.f32 %v1174, 6.0
  %v1303 = vmin.f32 %v1175, 6.0
  %v1304 = vmin.f32 %v1176, 6.0
  %v1305 = vmin.f32 %v1177, 6.0
  %v1306 = vmin.f32 %v1178, 6.0
  %v1307 = vmin.f32 %v1179, 6.0
  %v1308 = vmin.f32 %v1180, 6.0
  %v1309 = vmin.f32 %v1181, 6.0
  %v1310 = vmin.f32 %v1182, 6.0
  %v1311 = vmin.f32 %v1183, 6.0
  %v1312 = vmin.f32 %v1184, 6.0
  %v1313 = vmin.f32 %v1185, 6.0
  %v1314 = vmin.f32 %v1186, 6.0
  %v1315 = vmin.f32 %v1187, 6.0
  %v1316 = vmin.f32 %v1188, 6.0
  %v1317 = vmin.f32 %v1189, 6.0
  %v1318 = vmin.f32 %v1190, 6.0
  %v1319 = vmin.f32 %v1191, 6.0
  %v1320 = vmin.f32 %v1192, 6.0
  %v1321 = vmin.f32 %v1193, 6.0
  %v1322 = vmin.f32 %v1194, 6.0
  %v1323 = vmin.f32 %v1195, 6.0
  %v1324 = vmin.f32 %v1196, 6.0
  %v1325 = vmin.f32 %v1197, 6.0
  %v1326 = vmin.f32 %v1198, 6.0
  %v1327 = vmin.f32 %v1199, 6.0
  %v1328 = vmin.f32 %v1200, 6.0
  %v1329 = vmin.f32 %v1201, 6.0
  %v1330 = vmin.f32 %v1202, 6.0
  %v1331 = vmin.f32 %v1203, 6.0
  %v1332 = vmin.f32 %v1204, 6.0
  %v1333 = vmin.f32 %v1205, 6.0
  %v1334 = vmin.f32 %v1206, 6.0
  %v1335 = vmin.f32 %v1207, 6.0
  %v1336 = vmin.f32 %v1208, 6.0
  %v1337 = vmin.f32 %v1209, 6.0
  %v1338 = vmin.f32 %v1210, 6.0
  %v1339 = vmin.f32 %v1211, 6.0
  %v1340 = vmin.f32 %v1212, 6.0
  %v1341 = vmin.f32 %v1213, 6.0
  %v1342 = vmin.f32 %v1214, 6.0
  %v1343 = vmin.f32 %v1215, 6.0
  %v1344 = vmin.f32 %v1216, 6.0
  %v1345 = vmin.f32 %v1217, 6.0
  %v1346 = vmin.f32 %v1218, 6.0
  %v1347 = vmin.f32 %v1219, 6.0
  %v1348 = vmin.f32 %v1220, 6.0
  %v1349 = vmin.f32 %v1221, 6.0
  %v1350 = vmin.f32 %v1222, 6.0
  %v1351 = vmin.f32 %v1223, 6.0
  %v1352 = vmin.f32 %v1224, 6.0
  %v1353 = vmin.f32 %v1225, 6.0
  %v1354 = vmin.f32 %v1226, 6.0
  %v1355 = vmin.f32 %v1227, 6.0
  %v1356 = vmin.f32 %v1228, 6.0
  %v1357 = vmin.f32 %v1229, 6.0
  %v1358 = vmul.f32 %v464, %v1230
  %v1359 = vmul.f32 %v467, %v1231
  %v1360 = vmul.f32 %v472, %v1232
  %v1361 = vmul.f32 %v475, %v1233
  %v1362 = vmul.f32 %v480, %v1234
  %v1363 = vmul.f32 %v483, %v1235
  %v1364 = vmul.f32 %v488, %v1236
  %v1365 = vmul.f32 %v491, %v1237
  %v1366 = vmul.f32 %v496, %v1238
  %v1367 = vmul.f32 %v499, %v1239
  %v1368 = vmul.f32 %v504, %v1240
  %v1369 = vmul.f32 %v507, %v1241
  %v1370 = vmul.f32 %v512, %v1242
  %v1371 = vmul.f32 %v515, %v1243
  %v1372 = vmul.f32 %v520, %v1244
  %v1373 = vmul.f32 %v523, %v1245
  %v1374 = vmul.f32 %v528, %v1246
  %v1375 = vmul.f32 %v531, %v1247
  %v1376 = vmul.f32 %v536, %v1248
  %v1377 = vmul.f32 %v539, %v1249
  %v1378 = vmul.f32 %v544, %v1250
  %v1379 = vmul.f32 %v547, %v1251
  %v1380 = vmul.f32 %v552, %v1252
  %v1381 = vmul.f32 %v555, %v1253
  %v1382 = vmul.f32 %v560, %v1254
  %v1383 = vmul.f32 %v563, %v1255
  %v1384 = vmul.f32 %v568, %v1256
  %v1385 = vmul.f32 %v571, %v1257
  %v1386 = vmul.f32 %v576, %v1258
  %v1387 = vmul.f32 %v579, %v1259
  %v1388 = vmul.f32 %v584, %v1260
  %v1389 = vmul.f32 %v587, %v1261
  %v1390 = vmul.f32 %v592, %v1262
  %v1391 = vmul.f32 %v595, %v1263
  %v1392 = vmul.f32 %v600, %v1264
  %v1393 = vmul.f32 %v603, %v1265
  %v1394 = vmul.f32 %v608, %v1266
  %v1395 = vmul.f32 %v611, %v1267
  %v1396 = vmul.f32 %v616, %v1268
  %v1397 = vmul.f32 %v619, %v1269
  %v1398 = vmul.f32 %v624, %v1270
  %v1399 = vmul.f32 %v627, %v1271
  %v1400 = vmul.f32 %v632, %v1272
  %v1401 = vmul.f32 %v635, %v1273
  %v1402 = vmul.f32 %v640, %v1274
  %v1403 = vmul.f32 %v643, %v1275
  %v1404 = vmul.f32 %v648, %v1276
  %v1405 = vmul.f32 %v651, %v1277
  %v1406 = vmul.f32 %v656, %v1278
  %v1407 = vmul.f32 %v659, %v1279
  %v1408 = vmul.f32 %v664, %v1280
  %v1409 = vmul.f32 %v667, %v1281
  %v1410 = vmul.f32 %v672, %v1282
  %v1411 = vmul.f32 %v675, %v1283
  %v1412 = vmul.f32 %v680, %v1284
  %v1413 = vmul.f32 %v683, %v1285
  %v1414 = vmul.f32 %v688, %v1286
  %v1415 = vmul.f32 %v691, %v1287
  %v1416 = vmul.f32 %v696, %v1288
  %v1417 = vmul.f32 %v699, %v1289
  %v1418 = vmul.f32 %v704, %v1290
  %v1419 = vmul.f32 %v707, %v1291
  %v1420 = vmul.f32 %v712, %v1292
  %v1421 = vmul.f32 %v715, %v1293
  %v1422 = vmul.f32 %v720, %v1294
  %v1423 = vmul.f32 %v723, %v1295
  %v1424 = vmul.f32 %v728, %v1296
  %v1425 = vmul.f32 %v731, %v1297
  %v1426 = vmul.f32 %v736, %v1298
  %v1427 = vmul.f32 %v739, %v1299
  %v1428 = vmul.f32 %v744, %v1300
  %v1429 = vmul.f32 %v747, %v1301
  %v1430 = vmul.f32 %v752, %v1302
  %v1431 = vmul.f32 %v755, %v1303
  %v1432 = vmul.f32 %v760, %v1304
  %v1433 = vmul.f32 %v763, %v1305
  %v1434 = vmul.f32 %v768, %v1306
  %v1435 = vmul.f32 %v771, %v1307
  %v1436 = vmul.f32 %v776, %v1308
  %v1437 = vmul.f32 %v779, %v1309
  %v1438 = vmul.f32 %v784, %v1310
  %v1439 = vmul.f32 %v787, %v1311
  %v1440 = vmul.f32 %v792, %v1312
  %v1441 = vmul.f32 %v795, %v1313
  %v1442 = vmul.f32 %v800, %v1314
  %v1443 = vmul.f32 %v803, %v1315
  %v1444 = vmul.f32 %v808, %v1316
  %v1445 = vmul.f32 %v811, %v1317
  %v1446 = vmul.f32 %v816, %v1318
  %v1447 = vmul.f32 %v819, %v1319
  %v1448 = vmul.f32 %v824, %v1320
  %v1449 = vmul.f32 %v827, %v1321
  %v1450 = vmul.f32 %v832, %v1322
  %v1451 = vmul.f32 %v835, %v1323
  %v1452 = vmul.f32 %v840, %v1324
  %v1453 = vmul.f32 %v843, %v1325
  %v1454 = vmul.f32 %v848, %v1326
  %v1455 = vmul.f32 %v851, %v1327
  %v1456 = vmul.f32 %v856, %v1328
  %v1457 = vmul.f32 %v859, %v1329
  %v1458 = vmul.f32 %v864, %v1330
  %v1459 = vmul.f32 %v867, %v1331
  %v1460 = vmul.f32 %v872, %v1332
  %v1461 = vmul.f32 %v875, %v1333
  %v1462 = vmul.f32 %v880, %v1334
  %v1463 = vmul.f32 %v883, %v1335
  %v1464 = vmul.f32 %v888, %v1336
  %v1465 = vmul.f32 %v891, %v1337
  %v1466 = vmul.f32 %v896, %v1338
  %v1467 = vmul.f32 %v899, %v1339
  %v1468 = vmul.f32 %v904, %v1340
  %v1469 = vmul.f32 %v907, %v1341
  %v1470 = vmul.f32 %v912, %v1342
  %v1471 = vmul.f32 %v915, %v1343
  %v1472 = vmul.f32 %v920, %v1344
  %v1473 = vmul.f32 %v923, %v1345
  %v1474 = vmul.f32 %v928, %v1346
  %v1475 = vmul.f32 %v931, %v1347
  %v1476 = vmul.f32 %v936, %v1348
  %v1477 = vmul.f32 %v939, %v1349
  %v1478 = vmul.f32 %v944, %v1350
  %v1479 = vmul.f32 %v947, %v1351
  %v1480 = vmul.f32 %v952, %v1352
  %v1481 = vmul.f32 %v955, %v1353
  %v1482 = vmul.f32 %v960, %v1354
  %v1483 = vmul.f32 %v963, %v1355
  %v1484 = vmul.f32 %v968, %v1356
  %v1485 = vmul.f32 %v971, %v1357
  %v1486 = vrcp.pop 6.0
  %v1487 = vmul.f32 %v1358, %v1486
  %v1488 = vmul.f32 %v1359, %v1486
  %v1489 = vmul.f32 %v1360, %v1486
  %v1490 = vmul.f32 %v1361, %v1486
  %v1491 = vmul.f32 %v1362, %v1486
  %v1492 = vmul.f32 %v1363, %v1486
  %v1493 = vmul.f32 %v1364, %v1486
  %v1494 = vmul.f32 %v1365, %v1486
  %v1495 = vmul.f32 %v1366, %v1486
  %v1496 = vmul.f32 %v1367, %v1486
  %v1497 = vmul.f32 %v1368, %v1486
  %v1498 = vmul.f32 %v1369, %v1486
  %v1499 = vmul.f32 %v1370, %v1486
  %v1500 = vmul.f32 %v1371, %v1486
  %v1501 = vmul.f32 %v1372, %v1486
  %v1502 = vmul.f32 %v1373, %v1486
  %v1503 = vmul.f32 %v1374, %v1486
  %v1504 = vmul.f32 %v1375, %v1486
  %v1505 = vmul.f32 %v1376, %v1486
  %v1506 = vmul.f32 %v1377, %v1486
  %v1507 = vmul.f32 %v1378, %v1486
  %v1508 = vmul.f32 %v1379, %v1486
  %v1509 = vmul.f32 %v1380, %v1486
  %v1510 = vmul.f32 %v1381, %v1486
  %v1511 = vmul.f32 %v1382, %v1486
  %v1512 = vmul.f32 %v1383, %v1486
  %v1513 = vmul.f32 %v1384, %v1486
  %v1514 = vmul.f32 %v1385, %v1486
  %v1515 = vmul.f32 %v1386, %v1486
  %v1516 = vmul.f32 %v1387, %v1486
  %v1517 = vmul.f32 %v1388, %v1486
  %v1518 = vmul.f32 %v1389, %v1486
  %v1519 = vmul.f32 %v1390, %v1486
  %v1520 = vmul.f32 %v1391, %v1486
  %v1521 = vmul.f32 %v1392, %v1486
  %v1522 = vmul.f32 %v1393, %v1486
  %v1523 = vmul.f32 %v1394, %v1486
  %v1524 = vmul.f32 %v1395, %v1486
  %v1525 = vmul.f32 %v1396, %v1486
  %v1526 = vmul.f32 %v1397, %v1486
  %v1527 = vmul.f32 %v1398, %v1486
  %v1528 = vmul.f32 %v1399, %v1486
  %v1529 = vmul.f32 %v1400, %v1486
  %v1530 = vmul.f32 %v1401, %v1486
  %v1531 = vmul.f32 %v1402, %v1486
  %v1532 = vmul.f32 %v1403, %v1486
  %v1533 = vmul.f32 %v1404, %v1486
  %v1534 = vmul.f32 %v1405, %v1486
  %v1535 = vmul.f32 %v1406, %v1486
  %v1536 = vmul.f32 %v1407, %v1486
  %v1537 = vmul.f32 %v1408, %v1486
  %v1538 = vmul.f32 %v1409, %v1486
  %v1539 = vmul.f32 %v1410, %v1486
  %v1540 = vmul.f32 %v1411, %v1486
  %v1541 = vmul.f32 %v1412, %v1486
  %v1542 = vmul.f32 %v1413, %v1486
  %v1543 = vmul.f32 %v1414, %v1486
  %v1544 = vmul.f32 %v1415, %v1486
  %v1545 = vmul.f32 %v1416, %v1486
  %v1546 = vmul.f32 %v1417, %v1486
  %v1547 = vmul.f32 %v1418, %v1486
  %v1548 = vmul.f32 %v1419, %v1486
  %v1549 = vmul.f32 %v1420, %v1486
  %v1550 = vmul.f32 %v1421, %v1486
  %v1551 = vmul.f32 %v1422, %v1486
  %v1552 = vmul.f32 %v1423, %v1486
  %v1553 = vmul.f32 %v1424, %v1486
  %v1554 = vmul.f32 %v1425, %v1486
  %v1555 = vmul.f32 %v1426, %v1486
  %v1556 = vmul.f32 %v1427, %v1486
  %v1557 = vmul.f32 %v1428, %v1486
  %v1558 = vmul.f32 %v1429, %v1486
  %v1559 = vmul.f32 %v1430, %v1486
  %v1560 = vmul.f32 %v1431, %v1486
  %v1561 = vmul.f32 %v1432, %v1486
  %v1562 = vmul.f32 %v1433, %v1486
  %v1563 = vmul.f32 %v1434, %v1486
  %v1564 = vmul.f32 %v1435, %v1486
  %v1565 = vmul.f32 %v1436, %v1486
  %v1566 = vmul.f32 %v1437, %v1486
  %v1567 = vmul.f32 %v1438, %v1486
  %v1568 = vmul.f32 %v1439, %v1486
  %v1569 = vmul.f32 %v1440, %v1486
  %v1570 = vmul.f32 %v1441, %v1486
  %v1571 = vmul.f32 %v1442, %v1486
  %v1572 = vmul.f32 %v1443, %v1486
  %v1573 = vmul.f32 %v1444, %v1486
  %v1574 = vmul.f32 %v1445, %v1486
  %v1575 = vmul.f32 %v1446, %v1486
  %v1576 = vmul.f32 %v1447, %v1486
  %v1577 = vmul.f32 %v1448, %v1486
  %v1578 = vmul.f32 %v1449, %v1486
  %v1579 = vmul.f32 %v1450, %v1486
  %v1580 = vmul.f32 %v1451, %v1486
  %v1581 = vmul.f32 %v1452, %v1486
  %v1582 = vmul.f32 %v1453, %v1486
  %v1583 = vmul.f32 %v1454, %v1486
  %v1584 = vmul.f32 %v1455, %v1486
  %v1585 = vmul.f32 %v1456, %v1486
  %v1586 = vmul.f32 %v1457, %v1486
  %v1587 = vmul.f32 %v1458, %v1486
  %v1588 = vmul.f32 %v1459, %v1486
  %v1589 = vmul.f32 %v1460, %v1486
  %v1590 = vmul.f32 %v1461, %v1486
  %v1591 = vmul.f32 %v1462, %v1486
  %v1592 = vmul.f32 %v1463, %v1486
  %v1593 = vmul.f32 %v1464, %v1486
  %v1594 = vmul.f32 %v1465, %v1486
  %v1595 = vmul.f32 %v1466, %v1486
  %v1596 = vmul.f32 %v1467, %v1486
  %v1597 = vmul.f32 %v1468, %v1486
  %v1598 = vmul.f32 %v1469, %v1486
  %v1599 = vmul.f32 %v1470, %v1486
  %v1600 = vmul.f32 %v1471, %v1486
  %v1601 = vmul.f32 %v1472, %v1486
  %v1602 = vmul.f32 %v1473, %v1486
  %v1603 = vmul.f32 %v1474, %v1486
  %v1604 = vmul.f32 %v1475, %v1486
  %v1605 = vmul.f32 %v1476, %v1486
  %v1606 = vmul.f32 %v1477, %v1486
  %v1607 = vmul.f32 %v1478, %v1486
  %v1608 = vmul.f32 %v1479, %v1486
  %v1609 = vmul.f32 %v1480, %v1486
  %v1610 = vmul.f32 %v1481, %v1486
  %v1611 = vmul.f32 %v1482, %v1486
  %v1612 = vmul.f32 %v1483, %v1486
  %v1613 = vmul.f32 %v1484, %v1486
  %v1614 = vmul.f32 %v1485, %v1486
  %vm1615 = vcmask 130048
  %1616 = vst.msk [vmem:[%s3] sm:$0xff] %vm1615, %v1487
  %1617 = vst.msk [vmem:[%s3 + $0x8] sm:$0xff] %vm1615, %v1488
  %1618 = vst.msk [vmem:[%s3 + $0x10] sm:$0xff] %vm1615, %v1489
  %1619 = vst.msk [vmem:[%s3 + $0x18] sm:$0xff] %vm1615, %v1490
  %1620 = vst.msk [vmem:[%s3 + $0x20] sm:$0xff] %vm1615, %v1491
  %1621 = vst.msk [vmem:[%s3 + $0x28] sm:$0xff] %vm1615, %v1492
  %1622 = vst.msk [vmem:[%s3 + $0x30] sm:$0xff] %vm1615, %v1493
  %1623 = vst.msk [vmem:[%s3 + $0x38] sm:$0xff] %vm1615, %v1494
  %1624 = vst.msk [vmem:[%s3 + $0x40] sm:$0xff] %vm1615, %v1495
  %1625 = vst.msk [vmem:[%s3 + $0x48] sm:$0xff] %vm1615, %v1496
  %1626 = vst.msk [vmem:[%s3 + $0x50] sm:$0xff] %vm1615, %v1497
  %1627 = vst.msk [vmem:[%s3 + $0x58] sm:$0xff] %vm1615, %v1498
  %1628 = vst.msk [vmem:[%s3 + $0x60] sm:$0xff] %vm1615, %v1499
  %1629 = vst.msk [vmem:[%s3 + $0x68] sm:$0xff] %vm1615, %v1500
  %1630 = vst.msk [vmem:[%s3 + $0x70] sm:$0xff] %vm1615, %v1501
  %1631 = vst.msk [vmem:[%s3 + $0x78] sm:$0xff] %vm1615, %v1502
  %1632 = vst.msk [vmem:[%s3 + $0x80] sm:$0xff] %vm1615, %v1503
  %1633 = vst.msk [vmem:[%s3 + $0x88] sm:$0xff] %vm1615, %v1504
  %1634 = vst.msk [vmem:[%s3 + $0x90] sm:$0xff] %vm1615, %v1505
  %1635 = vst.msk [vmem:[%s3 + $0x98] sm:$0xff] %vm1615, %v1506
  %1636 = vst.msk [vmem:[%s3 + $0xa0] sm:$0xff] %vm1615, %v1507
  %1637 = vst.msk [vmem:[%s3 + $0xa8] sm:$0xff] %vm1615, %v1508
  %1638 = vst.msk [vmem:[%s3 + $0xb0] sm:$0xff] %vm1615, %v1509
  %1639 = vst.msk [vmem:[%s3 + $0xb8] sm:$0xff] %vm1615, %v1510
  %1640 = vst.msk [vmem:[%s3 + $0xc0] sm:$0xff] %vm1615, %v1511
  %1641 = vst.msk [vmem:[%s3 + $0xc8] sm:$0xff] %vm1615, %v1512
  %1642 = vst.msk [vmem:[%s3 + $0xd0] sm:$0xff] %vm1615, %v1513
  %1643 = vst.msk [vmem:[%s3 + $0xd8] sm:$0xff] %vm1615, %v1514
  %1644 = vst.msk [vmem:[%s3 + $0xe0] sm:$0xff] %vm1615, %v1515
  %1645 = vst.msk [vmem:[%s3 + $0xe8] sm:$0xff] %vm1615, %v1516
  %1646 = vst.msk [vmem:[%s3 + $0xf0] sm:$0xff] %vm1615, %v1517
  %1647 = vst.msk [vmem:[%s3 + $0xf8] sm:$0xff] %vm1615, %v1518
  %1648 = vst.msk [vmem:[%s3 + $0x100] sm:$0xff] %vm1615, %v1519
  %1649 = vst.msk [vmem:[%s3 + $0x108] sm:$0xff] %vm1615, %v1520
  %1650 = vst.msk [vmem:[%s3 + $0x110] sm:$0xff] %vm1615, %v1521
  %1651 = vst.msk [vmem:[%s3 + $0x118] sm:$0xff] %vm1615, %v1522
  %1652 = vst.msk [vmem:[%s3 + $0x120] sm:$0xff] %vm1615, %v1523
  %1653 = vst.msk [vmem:[%s3 + $0x128] sm:$0xff] %vm1615, %v1524
  %1654 = vst.msk [vmem:[%s3 + $0x130] sm:$0xff] %vm1615, %v1525
  %1655 = vst.msk [vmem:[%s3 + $0x138] sm:$0xff] %vm1615, %v1526
  %1656 = vst.msk [vmem:[%s3 + $0x140] sm:$0xff] %vm1615, %v1527
  %1657 = vst.msk [vmem:[%s3 + $0x148] sm:$0xff] %vm1615, %v1528
  %1658 = vst.msk [vmem:[%s3 + $0x150] sm:$0xff] %vm1615, %v1529
  %1659 = vst.msk [vmem:[%s3 + $0x158] sm:$0xff] %vm1615, %v1530
  %1660 = vst.msk [vmem:[%s3 + $0x160] sm:$0xff] %vm1615, %v1531
  %1661 = vst.msk [vmem:[%s3 + $0x168] sm:$0xff] %vm1615, %v1532
  %1662 = vst.msk [vmem:[%s3 + $0x170] sm:$0xff] %vm1615, %v1533
  %1663 = vst.msk [vmem:[%s3 + $0x178] sm:$0xff] %vm1615, %v1534
  %1664 = vst.msk [vmem:[%s3 + $0x180] sm:$0xff] %vm1615, %v1535
  %1665 = vst.msk [vmem:[%s3 + $0x188] sm:$0xff] %vm1615, %v1536
  %1666 = vst.msk [vmem:[%s3 + $0x190] sm:$0xff] %vm1615, %v1537
  %1667 = vst.msk [vmem:[%s3 + $0x198] sm:$0xff] %vm1615, %v1538
  %1668 = vst.msk [vmem:[%s3 + $0x1a0] sm:$0xff] %vm1615, %v1539
  %1669 = vst.msk [vmem:[%s3 + $0x1a8] sm:$0xff] %vm1615, %v1540
  %1670 = vst.msk [vmem:[%s3 + $0x1b0] sm:$0xff] %vm1615, %v1541
  %1671 = vst.msk [vmem:[%s3 + $0x1b8] sm:$0xff] %vm1615, %v1542
  %1672 = vst.msk [vmem:[%s3 + $0x1c0] sm:$0xff] %vm1615, %v1543
  %1673 = vst.msk [vmem:[%s3 + $0x1c8] sm:$0xff] %vm1615, %v1544
  %1674 = vst.msk [vmem:[%s3 + $0x1d0] sm:$0xff] %vm1615, %v1545
  %1675 = vst.msk [vmem:[%s3 + $0x1d8] sm:$0xff] %vm1615, %v1546
  %1676 = vst.msk [vmem:[%s3 + $0x1e0] sm:$0xff] %vm1615, %v1547
  %1677 = vst.msk [vmem:[%s3 + $0x1e8] sm:$0xff] %vm1615, %v1548
  %1678 = vst.msk [vmem:[%s3 + $0x1f0] sm:$0xff] %vm1615, %v1549
  %1679 = vst.msk [vmem:[%s3 + $0x1f8] sm:$0xff] %vm1615, %v1550
  %1680 = vst.msk [vmem:[%s3 + $0x200] sm:$0xff] %vm1615, %v1551
  %1681 = vst.msk [vmem:[%s3 + $0x208] sm:$0xff] %vm1615, %v1552
  %1682 = vst.msk [vmem:[%s3 + $0x210] sm:$0xff] %vm1615, %v1553
  %1683 = vst.msk [vmem:[%s3 + $0x218] sm:$0xff] %vm1615, %v1554
  %1684 = vst.msk [vmem:[%s3 + $0x220] sm:$0xff] %vm1615, %v1555
  %1685 = vst.msk [vmem:[%s3 + $0x228] sm:$0xff] %vm1615, %v1556
  %1686 = vst.msk [vmem:[%s3 + $0x230] sm:$0xff] %vm1615, %v1557
  %1687 = vst.msk [vmem:[%s3 + $0x238] sm:$0xff] %vm1615, %v1558
  %1688 = vst.msk [vmem:[%s3 + $0x240] sm:$0xff] %vm1615, %v1559
  %1689 = vst.msk [vmem:[%s3 + $0x248] sm:$0xff] %vm1615, %v1560
  %1690 = vst.msk [vmem:[%s3 + $0x250] sm:$0xff] %vm1615, %v1561
  %1691 = vst.msk [vmem:[%s3 + $0x258] sm:$0xff] %vm1615, %v1562
  %1692 = vst.msk [vmem:[%s3 + $0x260] sm:$0xff] %vm1615, %v1563
  %1693 = vst.msk [vmem:[%s3 + $0x268] sm:$0xff] %vm1615, %v1564
  %1694 = vst.msk [vmem:[%s3 + $0x270] sm:$0xff] %vm1615, %v1565
  %1695 = vst.msk [vmem:[%s3 + $0x278] sm:$0xff] %vm1615, %v1566
  %1696 = vst.msk [vmem:[%s3 + $0x280] sm:$0xff] %vm1615, %v1567
  %1697 = vst.msk [vmem:[%s3 + $0x288] sm:$0xff] %vm1615, %v1568
  %1698 = vst.msk [vmem:[%s3 + $0x290] sm:$0xff] %vm1615, %v1569
  %1699 = vst.msk [vmem:[%s3 + $0x298] sm:$0xff] %vm1615, %v1570
  %1700 = vst.msk [vmem:[%s3 + $0x2a0] sm:$0xff] %vm1615, %v1571
  %1701 = vst.msk [vmem:[%s3 + $0x2a8] sm:$0xff] %vm1615, %v1572
  %1702 = vst.msk [vmem:[%s3 + $0x2b0] sm:$0xff] %vm1615, %v1573
  %1703 = vst.msk [vmem:[%s3 + $0x2b8] sm:$0xff] %vm1615, %v1574
  %1704 = vst.msk [vmem:[%s3 + $0x2c0] sm:$0xff] %vm1615, %v1575
  %1705 = vst.msk [vmem:[%s3 + $0x2c8] sm:$0xff] %vm1615, %v1576
  %1706 = vst.msk [vmem:[%s3 + $0x2d0] sm:$0xff] %vm1615, %v1577
  %1707 = vst.msk [vmem:[%s3 + $0x2d8] sm:$0xff] %vm1615, %v1578
  %1708 = vst.msk [vmem:[%s3 + $0x2e0] sm:$0xff] %vm1615, %v1579
  %1709 = vst.msk [vmem:[%s3 + $0x2e8] sm:$0xff] %vm1615, %v1580
  %1710 = vst.msk [vmem:[%s3 + $0x2f0] sm:$0xff] %vm1615, %v1581
  %1711 = vst.msk [vmem:[%s3 + $0x2f8] sm:$0xff] %vm1615, %v1582
  %1712 = vst.msk [vmem:[%s3 + $0x300] sm:$0xff] %vm1615, %v1583
  %1713 = vst.msk [vmem:[%s3 + $0x308] sm:$0xff] %vm1615, %v1584
  %1714 = vst.msk [vmem:[%s3 + $0x310] sm:$0xff] %vm1615, %v1585
  %1715 = vst.msk [vmem:[%s3 + $0x318] sm:$0xff] %vm1615, %v1586
  %1716 = vst.msk [vmem:[%s3 + $0x320] sm:$0xff] %vm1615, %v1587
  %1717 = vst.msk [vmem:[%s3 + $0x328] sm:$0xff] %vm1615, %v1588
  %1718 = vst.msk [vmem:[%s3 + $0x330] sm:$0xff] %vm1615, %v1589
  %1719 = vst.msk [vmem:[%s3 + $0x338] sm:$0xff] %vm1615, %v1590
  %1720 = vst.msk [vmem:[%s3 + $0x340] sm:$0xff] %vm1615, %v1591
  %1721 = vst.msk [vmem:[%s3 + $0x348] sm:$0xff] %vm1615, %v1592
  %1722 = vst.msk [vmem:[%s3 + $0x350] sm:$0xff] %vm1615, %v1593
  %1723 = vst.msk [vmem:[%s3 + $0x358] sm:$0xff] %vm1615, %v1594
  %1724 = vst.msk [vmem:[%s3 + $0x360] sm:$0xff] %vm1615, %v1595
  %1725 = vst.msk [vmem:[%s3 + $0x368] sm:$0xff] %vm1615, %v1596
  %1726 = vst.msk [vmem:[%s3 + $0x370] sm:$0xff] %vm1615, %v1597
  %1727 = vst.msk [vmem:[%s3 + $0x378] sm:$0xff] %vm1615, %v1598
  %1728 = vst.msk [vmem:[%s3 + $0x380] sm:$0xff] %vm1615, %v1599
  %1729 = vst.msk [vmem:[%s3 + $0x388] sm:$0xff] %vm1615, %v1600
  %1730 = vst.msk [vmem:[%s3 + $0x390] sm:$0xff] %vm1615, %v1601
  %1731 = vst.msk [vmem:[%s3 + $0x398] sm:$0xff] %vm1615, %v1602
  %1732 = vst.msk [vmem:[%s3 + $0x3a0] sm:$0xff] %vm1615, %v1603
  %1733 = vst.msk [vmem:[%s3 + $0x3a8] sm:$0xff] %vm1615, %v1604
  %1734 = vst.msk [vmem:[%s3 + $0x3b0] sm:$0xff] %vm1615, %v1605
  %1735 = vst.msk [vmem:[%s3 + $0x3b8] sm:$0xff] %vm1615, %v1606
  %1736 = vst.msk [vmem:[%s3 + $0x3c0] sm:$0xff] %vm1615, %v1607
  %1737 = vst.msk [vmem:[%s3 + $0x3c8] sm:$0xff] %vm1615, %v1608
  %1738 = vst.msk [vmem:[%s3 + $0x3d0] sm:$0xff] %vm1615, %v1609
  %1739 = vst.msk [vmem:[%s3 + $0x3d8] sm:$0xff] %vm1615, %v1610
  %1740 = vst.msk [vmem:[%s3 + $0x3e0] sm:$0xff] %vm1615, %v1611
  %1741 = vst.msk [vmem:[%s3 + $0x3e8] sm:$0xff] %vm1615, %v1612
  %1742 = vst.msk [vmem:[%s3 + $0x3f0] sm:$0xff] %vm1615, %v1613
  %1743 = vst.msk [vmem:[%s3 + $0x3f8] sm:$0xff] %vm1615, %v1614
  // Predicated region
  $region14: #{tpu_custom_call.1} parent=0 // pred_check
    _
  $region15: #{tpu_custom_call.1} parent=0 // pred_check_branch
    %1745 = sbr.rel (0) target = $region17
  $region16: #{tpu_custom_call.1} parent=0 // pred_region
    _
  $region17: #{tpu_custom_call.1} parent=0 // pred_fallthru
    _
  // Predicated region
  $region18: #{tpu_custom_call.1} parent=0 // pred_check
    _
  $region19: #{tpu_custom_call.1} parent=0 // pred_check_branch
    %1747 = sbr.rel (0) target = $region21
  $region20: #{tpu_custom_call.1} parent=0 // pred_region
    _
  $region21: #{tpu_custom_call.1} parent=0 // pred_fallthru
    _

</llo_original>
